<compile_context>
chip_gen: v7x
topology: tpu7x:2x2x1
jax: 0.10.0
libtpu: 0.0.40
codegen_flags: <defaults>
</compile_context>

<pallas_src>
import jax
import jax.numpy as jnp
from jax.experimental import pallas as pl
from jax.experimental.pallas import tpu as pltpu

# ---------------- config (small, TPU-lane-friendly) ----------------
BATCH = 2
SEQ = 8
HIDDEN = 256
NUM_HEADS = 2
NUM_KV_HEADS = 1
HEAD_DIM = HIDDEN // NUM_HEADS          # 128
N_REP = NUM_HEADS // NUM_KV_HEADS       # repeat_kv factor (GQA) == 2
INTERMEDIATE = 512
EPS = 1e-6
SCALING = HEAD_DIM ** -0.5
NEG_INF = -1e9

Q_DIM = NUM_HEADS * HEAD_DIM            # 256
KV_DIM = NUM_KV_HEADS * HEAD_DIM        # 128
HALF = HEAD_DIM // 2


def _rmsnorm_f32(x_f32, w):
    var = jnp.mean(x_f32 * x_f32, axis=-1, keepdims=True)
    return (x_f32 * jax.lax.rsqrt(var + EPS)) * w   # w: (1, HIDDEN), broadcasts


def _bf16(x):
    return x.astype(jnp.bfloat16)


# ---------------- fused decoder-layer kernel ----------------
def decoder_layer_kernel(x_ref, cos2_ref, sin2_ref, mask2_ref,
                         ln1_ref, wqkv_ref, bqkv_ref, wo_ref,
                         ln2_ref, wgu_ref, wd_ref, out_ref):
    x = x_ref[...].astype(jnp.float32)                      # (S, H)

    # ---- input RMSNorm + fused QKV projection (+bias) ----
    h = _rmsnorm_f32(x, ln1_ref[...])                       # f32
    qkv = jnp.dot(_bf16(h), wqkv_ref[...],
                  preferred_element_type=jnp.float32) + bqkv_ref[...]
    q = qkv[:, :Q_DIM]                                      # (S, 2*HEAD_DIM)
    k = qkv[:, Q_DIM:Q_DIM + KV_DIM]                        # (S, HEAD_DIM)
    v = qkv[:, Q_DIM + KV_DIM:]                             # (S, HEAD_DIM)

    # stack the two query heads along sublanes -> (2*S, HEAD_DIM)
    q2 = jnp.concatenate([q[:, :HEAD_DIM], q[:, HEAD_DIM:]], axis=0)

    # ---- RoPE via roll + sign-folded sin (rotate_half(x) == roll(x, D/2) * sign) ----
    cos2 = cos2_ref[...]                                    # (2*S, HEAD_DIM)
    sin2 = sin2_ref[...]                                    # sign-folded, (2*S, HEAD_DIM)
    q2 = q2 * cos2 + pltpu.roll(q2, shift=HALF, axis=1) * sin2
    k = k * cos2[:SEQ] + pltpu.roll(k, shift=HALF, axis=1) * sin2[:SEQ]

    # ---- attention: both GQA heads in one (2*S, S) scores tile ----
    s = jax.lax.dot_general(_bf16(q2), _bf16(k), (((1,), (1,)), ((), ())),
                            preferred_element_type=jnp.float32)   # (2*S, S)
    s = s * SCALING + mask2_ref[...]
    s = s - jnp.max(s, axis=-1, keepdims=True)
    p = jnp.exp(s)
    p = p * pl.reciprocal(jnp.sum(p, axis=-1, keepdims=True), approx=True)

    attn = jnp.dot(_bf16(p), _bf16(v),
                   preferred_element_type=jnp.float32)      # (2*S, HEAD_DIM)

    # o_proj: two half-matmuls (one per head) summed -> no lane concatenate
    wo = wo_ref[...]
    o = (jnp.dot(_bf16(attn[:SEQ]), wo[:HEAD_DIM, :],
                 preferred_element_type=jnp.float32)
         + jnp.dot(_bf16(attn[SEQ:]), wo[HEAD_DIM:, :],
                   preferred_element_type=jnp.float32))     # (S, H)
    x = x + o                                               # attention residual (f32)

    # ---- post-attention RMSNorm + fused gate|up + SwiGLU + down ----
    h2 = _rmsnorm_f32(x, ln2_ref[...])
    gu = jnp.dot(_bf16(h2), wgu_ref[...],
                 preferred_element_type=jnp.float32)        # (S, 2*I)
    g = gu[:, :INTERMEDIATE]
    u = gu[:, INTERMEDIATE:]
    a = (g * jax.nn.sigmoid(g)) * u                         # SiLU(gate) * up, f32
    d = jnp.dot(_bf16(a), wd_ref[...],
                preferred_element_type=jnp.float32)         # (S, H)

    out_ref[...] = (x + d).astype(out_ref.dtype)


# ---------------- wrapper ----------------
def _const_spec(a):
    n = a.ndim
    return pl.BlockSpec(a.shape, lambda b, n=n: (0,) * n)


def qwen2_edge_decoder_layer(x, params, cos, sin, mask):
    B, S, H = x.shape

    # fused bf16 matmul weights (weights were already bf16-rounded at init)
    wqkv = _bf16(jnp.concatenate([params["wq"], params["wk"], params["wv"]], axis=1))
    bqkv = jnp.concatenate([params["bq"], params["bk"], params["bv"]], axis=1)
    wo = _bf16(params["wo"])
    wgu = _bf16(jnp.concatenate([params["wg"], params["wu"]], axis=1))
    wd = _bf16(params["wd"])

    # RoPE tables: sign-fold sin for the roll-based rotate_half, then tile for the
    # (2*S, HEAD_DIM) stacked-heads layout; same for the causal mask.
    sign = jnp.concatenate([-jnp.ones((1, HALF), jnp.float32),
                            jnp.ones((1, HALF), jnp.float32)], axis=1)
    sin_signed = sin * sign
    cos2 = jnp.concatenate([cos, cos], axis=0)              # (2*S, HEAD_DIM)
    sin2 = jnp.concatenate([sin_signed, sin_signed], axis=0)
    mask2 = jnp.concatenate([mask, mask], axis=0)           # (2*S, S)

    per_batch = pl.BlockSpec((None, S, H), lambda b: (b, 0, 0))

    return pl.pallas_call(
        decoder_layer_kernel,
        out_shape=jax.ShapeDtypeStruct((B, S, H), x.dtype),
        grid=(B,),
        in_specs=[per_batch,
                  _const_spec(cos2), _const_spec(sin2), _const_spec(mask2),
                  _const_spec(params["ln1"]), _const_spec(wqkv), _const_spec(bqkv),
                  _const_spec(wo),
                  _const_spec(params["ln2"]), _const_spec(wgu), _const_spec(wd)],
        out_specs=per_batch,
        compiler_params=pltpu.CompilerParams(dimension_semantics=("parallel",)),
    )(x, cos2, sin2, mask2,
      params["ln1"], wqkv, bqkv, wo,
      params["ln2"], wgu, wd)


# ---------------- pure-JAX reference (mirrors the PyTorch module, f32) ----------------
def _rotate_half(x):
    half = x.shape[-1] // 2
    return jnp.concatenate([-x[..., half:], x[..., :half]], axis=-1)


def reference_decoder_layer(x, params, cos, sin, mask):
    def rms(v, w):
        vf = v.astype(jnp.float32)
        var = jnp.mean(vf * vf, axis=-1, keepdims=True)
        return (w[0] * (vf * jax.lax.rsqrt(var + EPS))).astype(v.dtype)

    B, S, _ = x.shape
    residual = x
    h = rms(x, params["ln1"])
    q = h @ params["wq"] + params["bq"][0]
    k = h @ params["wk"] + params["bk"][0]
    v = h @ params["wv"] + params["bv"][0]
    q = q.reshape(B, S, NUM_HEADS, HEAD_DIM).transpose(0, 2, 1, 3)
    k = k.reshape(B, S, NUM_KV_HEADS, HEAD_DIM).transpose(0, 2, 1, 3)
    v = v.reshape(B, S, NUM_KV_HEADS, HEAD_DIM).transpose(0, 2, 1, 3)
    c = cos[None, None]
    s = sin[None, None]
    q = q * c + _rotate_half(q) * s
    k = k * c + _rotate_half(k) * s
    k = jnp.repeat(k, N_REP, axis=1)
    v = jnp.repeat(v, N_REP, axis=1)
    attn = jnp.einsum("bhqd,bhkd->bhqk", q, k) * SCALING + mask[None, None]
    attn = jax.nn.softmax(attn.astype(jnp.float32), axis=-1)
    o = jnp.einsum("bhqk,bhkd->bhqd", attn, v)
    o = o.transpose(0, 2, 1, 3).reshape(B, S, HIDDEN) @ params["wo"]
    x = residual + o

    residual = x
    h = rms(x, params["ln2"])
    g = h @ params["wg"]
    u = h @ params["wu"]
    mlp = (g * jax.nn.sigmoid(g) * u) @ params["wd"]
    return residual + mlp


# ---------------- setup & run ----------------
def make_params(key):
    ks = jax.random.split(key, 8)
    scale = 0.05

    def w(k, shape):
        # round matmul weights through bf16 so kernel (bf16) and reference (f32)
        # see bit-identical weight values.
        v = (scale * jax.random.normal(k, shape)).astype(jnp.bfloat16)
        return v.astype(jnp.float32)

    return {
        "ln1": jnp.ones((1, HIDDEN), jnp.float32),
        "ln2": jnp.ones((1, HIDDEN), jnp.float32),
        "wq": w(ks[0], (HIDDEN, Q_DIM)),
        "bq": (scale * jax.random.normal(ks[1], (1, Q_DIM))).astype(jnp.float32),
        "wk": w(ks[2], (HIDDEN, KV_DIM)),
        "bk": (scale * jax.random.normal(ks[3], (1, KV_DIM))).astype(jnp.float32),
        "wv": w(ks[4], (HIDDEN, KV_DIM)),
        "bv": (scale * jax.random.normal(ks[5], (1, KV_DIM))).astype(jnp.float32),
        "wo": w(ks[6], (Q_DIM, HIDDEN)),
        "wg": w(ks[7], (HIDDEN, INTERMEDIATE)),
        "wu": w(jax.random.fold_in(key, 100), (HIDDEN, INTERMEDIATE)),
        "wd": w(jax.random.fold_in(key, 101), (INTERMEDIATE, HIDDEN)),
    }


def make_rope(seq, dim):
    pos = jnp.arange(seq, dtype=jnp.float32)
    inv_freq = 1.0 / (10000.0 ** (jnp.arange(0, dim, 2, dtype=jnp.float32) / dim))
    freqs = jnp.einsum("s,d->sd", pos, inv_freq)
    emb = jnp.concatenate([freqs, freqs], axis=-1)
    return jnp.cos(emb), jnp.sin(emb)


if __name__ == "__main__":
    key = jax.random.PRNGKey(0)
    kx, kp = jax.random.split(key)

    x = jax.random.normal(kx, (BATCH, SEQ, HIDDEN), dtype=jnp.float32)
    params = make_params(kp)
    cos, sin = make_rope(SEQ, HEAD_DIM)

    causal = jnp.tril(jnp.ones((SEQ, SEQ), dtype=bool))
    mask = jnp.where(causal, 0.0, NEG_INF).astype(jnp.float32)   # (SEQ, SEQ), shared

    out = qwen2_edge_decoder_layer(x, params, cos, sin, mask)
    out = jax.block_until_ready(out)

    ref = reference_decoder_layer(x, params, cos, sin, mask)
    assert out.shape == (BATCH, SEQ, HIDDEN)
    err = jnp.max(jnp.abs(out - ref))
    # bf16 MXU inputs + approx reciprocal -> loosened tolerance (f32 accumulation kept)
    assert jnp.allclose(out, ref, rtol=2e-2, atol=2e-2), f"max abs err {err}"

    print("KERNEL_OK")
</pallas_src>

<mosaic_0001>
module attributes {stable_mosaic.version = 11 : i64} {
  func.func @decoder_layer_kernel(%arg0: i32, %arg1: memref<1x8x256xf32, #tpu.memory_space<vmem>>, %arg2: memref<16x128xf32, #tpu.memory_space<vmem>>, %arg3: memref<16x128xf32, #tpu.memory_space<vmem>>, %arg4: memref<16x8xf32, #tpu.memory_space<vmem>>, %arg5: memref<1x256xf32, #tpu.memory_space<vmem>>, %arg6: memref<256x512xbf16, #tpu.memory_space<vmem>>, %arg7: memref<1x512xf32, #tpu.memory_space<vmem>>, %arg8: memref<256x256xbf16, #tpu.memory_space<vmem>>, %arg9: memref<1x256xf32, #tpu.memory_space<vmem>>, %arg10: memref<256x1024xbf16, #tpu.memory_space<vmem>>, %arg11: memref<512x256xbf16, #tpu.memory_space<vmem>>, %arg12: memref<1x8x256xf32, #tpu.memory_space<vmem>>) attributes {dimension_semantics = [#tpu.dimension_semantics<parallel>], iteration_bounds = array<i64: 2>, scalar_prefetch = 0 : i64, scratch_operands = 0 : i64, tpu.core_type = #tpu.core_type<tc>, window_params = [{transform_indices = @transform_0, window_bounds = array<i64: 1, 8, 256>}, {pipeline_mode = #tpu.pipeline_mode<synchronous>, transform_indices = @transform_1, window_bounds = array<i64: 16, 128>}, {pipeline_mode = #tpu.pipeline_mode<synchronous>, transform_indices = @transform_2, window_bounds = array<i64: 16, 128>}, {pipeline_mode = #tpu.pipeline_mode<synchronous>, transform_indices = @transform_3, window_bounds = array<i64: 16, 8>}, {pipeline_mode = #tpu.pipeline_mode<synchronous>, transform_indices = @transform_4, window_bounds = array<i64: 1, 256>}, {pipeline_mode = #tpu.pipeline_mode<synchronous>, transform_indices = @transform_5, window_bounds = array<i64: 256, 512>}, {pipeline_mode = #tpu.pipeline_mode<synchronous>, transform_indices = @transform_6, window_bounds = array<i64: 1, 512>}, {pipeline_mode = #tpu.pipeline_mode<synchronous>, transform_indices = @transform_7, window_bounds = array<i64: 256, 256>}, {pipeline_mode = #tpu.pipeline_mode<synchronous>, transform_indices = @transform_8, window_bounds = array<i64: 1, 256>}, {pipeline_mode = #tpu.pipeline_mode<synchronous>, transform_indices = @transform_9, window_bounds = array<i64: 256, 1024>}, {pipeline_mode = #tpu.pipeline_mode<synchronous>, transform_indices = @transform_10, window_bounds = array<i64: 512, 256>}, {transform_indices = @transform_11, window_bounds = array<i64: 1, 8, 256>}]} {
    %c0 = arith.constant 0 : index
    %c0_0 = arith.constant 0 : index
    %c0_1 = arith.constant 0 : index
    %0 = vector.load %arg1[%c0, %c0_0, %c0_1] : memref<1x8x256xf32, #tpu.memory_space<vmem>>, vector<1x8x256xf32>
    %1 = vector.shape_cast %0 : vector<1x8x256xf32> to vector<8x256xf32>
    %c0_2 = arith.constant 0 : index
    %c0_3 = arith.constant 0 : index
    %2 = vector.load %arg5[%c0_2, %c0_3] : memref<1x256xf32, #tpu.memory_space<vmem>>, vector<1x256xf32>
    %3 = arith.mulf %1, %1 : vector<8x256xf32>
    %cst = arith.constant dense<0.000000e+00> : vector<8xf32>
    %4 = vector.multi_reduction <add>, %3, %cst [1] : vector<8x256xf32> to vector<8xf32>
    %5 = vector.shape_cast %4 : vector<8xf32> to vector<8x1xf32>
    %cst_4 = arith.constant 2.560000e+02 : f32
    %6 = vector.broadcast %cst_4 : f32 to vector<8x1xf32>
    %7 = arith.divf %5, %6 : vector<8x1xf32>
    %cst_5 = arith.constant 9.99999997E-7 : f32
    %8 = vector.broadcast %cst_5 : f32 to vector<8x1xf32>
    %9 = arith.addf %7, %8 : vector<8x1xf32>
    %10 = math.rsqrt %9 : vector<8x1xf32>
    %11 = vector.broadcast %10 : vector<8x1xf32> to vector<8x256xf32>
    %12 = arith.mulf %1, %11 : vector<8x256xf32>
    %13 = vector.broadcast %2 : vector<1x256xf32> to vector<8x256xf32>
    %14 = arith.mulf %12, %13 : vector<8x256xf32>
    %15 = arith.truncf %14 : vector<8x256xf32> to vector<8x256xbf16>
    %c0_6 = arith.constant 0 : index
    %c0_7 = arith.constant 0 : index
    %16 = vector.load %arg6[%c0_6, %c0_7] : memref<256x512xbf16, #tpu.memory_space<vmem>>, vector<256x512xbf16>
    %cst_8 = arith.constant dense<0.000000e+00> : vector<8x512xf32>
    %17 = tpu.matmul %15, %16, %cst_8 {dimension_numbers = #tpu.dot_dimension_numbers<[1], [0], [0], [1], [0, 0, 1, 1], [], []>} : vector<8x256xbf16>, vector<256x512xbf16>, vector<8x512xf32> -> vector<8x512xf32>
    %c0_9 = arith.constant 0 : index
    %c0_10 = arith.constant 0 : index
    %18 = vector.load %arg7[%c0_9, %c0_10] : memref<1x512xf32, #tpu.memory_space<vmem>>, vector<1x512xf32>
    %19 = vector.broadcast %18 : vector<1x512xf32> to vector<8x512xf32>
    %20 = arith.addf %17, %19 : vector<8x512xf32>
    %21 = vector.extract_strided_slice %20 {offsets = [0, 0], sizes = [8, 256], strides = [1, 1]} : vector<8x512xf32> to vector<8x256xf32>
    %22 = vector.extract_strided_slice %20 {offsets = [0, 256], sizes = [8, 128], strides = [1, 1]} : vector<8x512xf32> to vector<8x128xf32>
    %23 = vector.extract_strided_slice %20 {offsets = [0, 384], sizes = [8, 128], strides = [1, 1]} : vector<8x512xf32> to vector<8x128xf32>
    %24 = vector.extract_strided_slice %21 {offsets = [0, 0], sizes = [8, 128], strides = [1, 1]} : vector<8x256xf32> to vector<8x128xf32>
    %25 = vector.extract_strided_slice %21 {offsets = [0, 128], sizes = [8, 128], strides = [1, 1]} : vector<8x256xf32> to vector<8x128xf32>
    %26 = tpu.concatenate %24, %25 in 0 : vector<8x128xf32>, vector<8x128xf32> -> vector<16x128xf32>
    %c0_11 = arith.constant 0 : index
    %c0_12 = arith.constant 0 : index
    %27 = vector.load %arg2[%c0_11, %c0_12] : memref<16x128xf32, #tpu.memory_space<vmem>>, vector<16x128xf32>
    %c0_13 = arith.constant 0 : index
    %c0_14 = arith.constant 0 : index
    %28 = vector.load %arg3[%c0_13, %c0_14] : memref<16x128xf32, #tpu.memory_space<vmem>>, vector<16x128xf32>
    %29 = arith.mulf %26, %27 : vector<16x128xf32>
    %c64_i32 = arith.constant 64 : i32
    %30 = tpu.dynamic_rotate %26 by %c64_i32 dim 1 : vector<16x128xf32>, i32 -> vector<16x128xf32>
    %31 = arith.mulf %30, %28 : vector<16x128xf32>
    %32 = arith.addf %29, %31 : vector<16x128xf32>
    %33 = vector.extract_strided_slice %27 {offsets = [0, 0], sizes = [8, 128], strides = [1, 1]} : vector<16x128xf32> to vector<8x128xf32>
    %34 = arith.mulf %22, %33 : vector<8x128xf32>
    %c64_i32_15 = arith.constant 64 : i32
    %35 = tpu.dynamic_rotate %22 by %c64_i32_15 dim 1 : vector<8x128xf32>, i32 -> vector<8x128xf32>
    %36 = vector.extract_strided_slice %28 {offsets = [0, 0], sizes = [8, 128], strides = [1, 1]} : vector<16x128xf32> to vector<8x128xf32>
    %37 = arith.mulf %35, %36 : vector<8x128xf32>
    %38 = arith.addf %34, %37 : vector<8x128xf32>
    %39 = arith.truncf %32 : vector<16x128xf32> to vector<16x128xbf16>
    %40 = arith.truncf %38 : vector<8x128xf32> to vector<8x128xbf16>
    %cst_16 = arith.constant dense<0.000000e+00> : vector<16x8xf32>
    %41 = tpu.matmul %39, %40, %cst_16 {dimension_numbers = #tpu.dot_dimension_numbers<[1], [1], [0], [0], [0, 0, 1, 0], [], []>} : vector<16x128xbf16>, vector<8x128xbf16>, vector<16x8xf32> -> vector<16x8xf32>
    %cst_17 = arith.constant 0.0883883461 : f32
    %42 = vector.broadcast %cst_17 : f32 to vector<16x8xf32>
    %43 = arith.mulf %41, %42 : vector<16x8xf32>
    %c0_18 = arith.constant 0 : index
    %c0_19 = arith.constant 0 : index
    %44 = vector.load %arg4[%c0_18, %c0_19] : memref<16x8xf32, #tpu.memory_space<vmem>>, vector<16x8xf32>
    %45 = arith.addf %43, %44 : vector<16x8xf32>
    %cst_20 = arith.constant dense<0xFF800000> : vector<16xf32>
    %46 = vector.multi_reduction <maximumf>, %45, %cst_20 [1] : vector<16x8xf32> to vector<16xf32>
    %47 = vector.shape_cast %46 : vector<16xf32> to vector<16x1xf32>
    %48 = vector.broadcast %47 : vector<16x1xf32> to vector<16x8xf32>
    %49 = arith.subf %45, %48 : vector<16x8xf32>
    %50 = math.exp %49 : vector<16x8xf32>
    %cst_21 = arith.constant dense<0.000000e+00> : vector<16xf32>
    %51 = vector.multi_reduction <add>, %50, %cst_21 [1] : vector<16x8xf32> to vector<16xf32>
    %52 = vector.shape_cast %51 : vector<16xf32> to vector<16x1xf32>
    %53 = tpu.reciprocal %52 {approx = true} : vector<16x1xf32> -> vector<16x1xf32>
    %54 = vector.broadcast %53 : vector<16x1xf32> to vector<16x8xf32>
    %55 = arith.mulf %50, %54 : vector<16x8xf32>
    %56 = arith.truncf %55 : vector<16x8xf32> to vector<16x8xbf16>
    %57 = arith.truncf %23 : vector<8x128xf32> to vector<8x128xbf16>
    %cst_22 = arith.constant dense<0.000000e+00> : vector<16x128xf32>
    %58 = tpu.matmul %56, %57, %cst_22 {dimension_numbers = #tpu.dot_dimension_numbers<[1], [0], [0], [1], [0, 0, 1, 1], [], []>} : vector<16x8xbf16>, vector<8x128xbf16>, vector<16x128xf32> -> vector<16x128xf32>
    %c0_23 = arith.constant 0 : index
    %c0_24 = arith.constant 0 : index
    %59 = vector.load %arg8[%c0_23, %c0_24] : memref<256x256xbf16, #tpu.memory_space<vmem>>, vector<256x256xbf16>
    %60 = vector.extract_strided_slice %58 {offsets = [0, 0], sizes = [8, 128], strides = [1, 1]} : vector<16x128xf32> to vector<8x128xf32>
    %61 = arith.truncf %60 : vector<8x128xf32> to vector<8x128xbf16>
    %62 = vector.extract_strided_slice %59 {offsets = [0, 0], sizes = [128, 256], strides = [1, 1]} : vector<256x256xbf16> to vector<128x256xbf16>
    %cst_25 = arith.constant dense<0.000000e+00> : vector<8x256xf32>
    %63 = tpu.matmul %61, %62, %cst_25 {dimension_numbers = #tpu.dot_dimension_numbers<[1], [0], [0], [1], [0, 0, 1, 1], [], []>} : vector<8x128xbf16>, vector<128x256xbf16>, vector<8x256xf32> -> vector<8x256xf32>
    %64 = vector.extract_strided_slice %58 {offsets = [8, 0], sizes = [8, 128], strides = [1, 1]} : vector<16x128xf32> to vector<8x128xf32>
    %65 = arith.truncf %64 : vector<8x128xf32> to vector<8x128xbf16>
    %66 = vector.extract_strided_slice %59 {offsets = [128, 0], sizes = [128, 256], strides = [1, 1]} : vector<256x256xbf16> to vector<128x256xbf16>
    %cst_26 = arith.constant dense<0.000000e+00> : vector<8x256xf32>
    %67 = tpu.matmul %65, %66, %cst_26 {dimension_numbers = #tpu.dot_dimension_numbers<[1], [0], [0], [1], [0, 0, 1, 1], [], []>} : vector<8x128xbf16>, vector<128x256xbf16>, vector<8x256xf32> -> vector<8x256xf32>
    %68 = arith.addf %63, %67 : vector<8x256xf32>
    %69 = arith.addf %1, %68 : vector<8x256xf32>
    %c0_27 = arith.constant 0 : index
    %c0_28 = arith.constant 0 : index
    %70 = vector.load %arg9[%c0_27, %c0_28] : memref<1x256xf32, #tpu.memory_space<vmem>>, vector<1x256xf32>
    %71 = arith.mulf %69, %69 : vector<8x256xf32>
    %cst_29 = arith.constant dense<0.000000e+00> : vector<8xf32>
    %72 = vector.multi_reduction <add>, %71, %cst_29 [1] : vector<8x256xf32> to vector<8xf32>
    %73 = vector.shape_cast %72 : vector<8xf32> to vector<8x1xf32>
    %cst_30 = arith.constant 2.560000e+02 : f32
    %74 = vector.broadcast %cst_30 : f32 to vector<8x1xf32>
    %75 = arith.divf %73, %74 : vector<8x1xf32>
    %cst_31 = arith.constant 9.99999997E-7 : f32
    %76 = vector.broadcast %cst_31 : f32 to vector<8x1xf32>
    %77 = arith.addf %75, %76 : vector<8x1xf32>
    %78 = math.rsqrt %77 : vector<8x1xf32>
    %79 = vector.broadcast %78 : vector<8x1xf32> to vector<8x256xf32>
    %80 = arith.mulf %69, %79 : vector<8x256xf32>
    %81 = vector.broadcast %70 : vector<1x256xf32> to vector<8x256xf32>
    %82 = arith.mulf %80, %81 : vector<8x256xf32>
    %83 = arith.truncf %82 : vector<8x256xf32> to vector<8x256xbf16>
    %c0_32 = arith.constant 0 : index
    %c0_33 = arith.constant 0 : index
    %84 = vector.load %arg10[%c0_32, %c0_33] : memref<256x1024xbf16, #tpu.memory_space<vmem>>, vector<256x1024xbf16>
    %cst_34 = arith.constant dense<0.000000e+00> : vector<8x1024xf32>
    %85 = tpu.matmul %83, %84, %cst_34 {dimension_numbers = #tpu.dot_dimension_numbers<[1], [0], [0], [1], [0, 0, 1, 1], [], []>} : vector<8x256xbf16>, vector<256x1024xbf16>, vector<8x1024xf32> -> vector<8x1024xf32>
    %86 = vector.extract_strided_slice %85 {offsets = [0, 0], sizes = [8, 512], strides = [1, 1]} : vector<8x1024xf32> to vector<8x512xf32>
    %87 = vector.extract_strided_slice %85 {offsets = [0, 512], sizes = [8, 512], strides = [1, 1]} : vector<8x1024xf32> to vector<8x512xf32>
    %88 = arith.negf %86 : vector<8x512xf32>
    %89 = math.exp %88 : vector<8x512xf32>
    %cst_35 = arith.constant 1.000000e+00 : f32
    %90 = vector.broadcast %cst_35 : f32 to vector<8x512xf32>
    %91 = arith.addf %90, %89 : vector<8x512xf32>
    %92 = arith.divf %90, %91 : vector<8x512xf32>
    %93 = arith.mulf %86, %92 : vector<8x512xf32>
    %94 = arith.mulf %93, %87 : vector<8x512xf32>
    %95 = arith.truncf %94 : vector<8x512xf32> to vector<8x512xbf16>
    %c0_36 = arith.constant 0 : index
    %c0_37 = arith.constant 0 : index
    %96 = vector.load %arg11[%c0_36, %c0_37] : memref<512x256xbf16, #tpu.memory_space<vmem>>, vector<512x256xbf16>
    %cst_38 = arith.constant dense<0.000000e+00> : vector<8x256xf32>
    %97 = tpu.matmul %95, %96, %cst_38 {dimension_numbers = #tpu.dot_dimension_numbers<[1], [0], [0], [1], [0, 0, 1, 1], [], []>} : vector<8x512xbf16>, vector<512x256xbf16>, vector<8x256xf32> -> vector<8x256xf32>
    %98 = arith.addf %69, %97 : vector<8x256xf32>
    %c0_39 = arith.constant 0 : index
    %c0_40 = arith.constant 0 : index
    %c0_41 = arith.constant 0 : index
    %99 = vector.load %arg12[%c0_39, %c0_40, %c0_41] : memref<1x8x256xf32, #tpu.memory_space<vmem>>, vector<1x8x256xf32>
    %100 = vector.shape_cast %99 : vector<1x8x256xf32> to vector<8x256xf32>
    %101 = vector.shape_cast %98 : vector<8x256xf32> to vector<1x8x256xf32>
    tpu.vector_store %arg12[%c0_39, %c0_40, %c0_41], %101 {strides = array<i32>} : memref<1x8x256xf32, #tpu.memory_space<vmem>>, vector<1x8x256xf32>,
    return
  }
  func.func @transform_0(%arg0: i32) -> (i32, i32, i32) {
    %c0_i32 = arith.constant 0 : i32
    %c0_i32_0 = arith.constant 0 : i32
    %c0_i32_1 = arith.constant 0 : i32
    return %arg0, %c0_i32, %c0_i32_0 : i32, i32, i32
  }
  func.func @transform_1(%arg0: i32) -> (i32, i32) {
    %c0_i32 = arith.constant 0 : i32
    %c0_i32_0 = arith.constant 0 : i32
    %c0_i32_1 = arith.constant 0 : i32
    return %c0_i32, %c0_i32_0 : i32, i32
  }
  func.func @transform_2(%arg0: i32) -> (i32, i32) {
    %c0_i32 = arith.constant 0 : i32
    %c0_i32_0 = arith.constant 0 : i32
    %c0_i32_1 = arith.constant 0 : i32
    return %c0_i32, %c0_i32_0 : i32, i32
  }
  func.func @transform_3(%arg0: i32) -> (i32, i32) {
    %c0_i32 = arith.constant 0 : i32
    %c0_i32_0 = arith.constant 0 : i32
    %c0_i32_1 = arith.constant 0 : i32
    return %c0_i32, %c0_i32_0 : i32, i32
  }
  func.func @transform_4(%arg0: i32) -> (i32, i32) {
    %c0_i32 = arith.constant 0 : i32
    %c0_i32_0 = arith.constant 0 : i32
    %c0_i32_1 = arith.constant 0 : i32
    return %c0_i32, %c0_i32_0 : i32, i32
  }
  func.func @transform_5(%arg0: i32) -> (i32, i32) {
    %c0_i32 = arith.constant 0 : i32
    %c0_i32_0 = arith.constant 0 : i32
    %c0_i32_1 = arith.constant 0 : i32
    return %c0_i32, %c0_i32_0 : i32, i32
  }
  func.func @transform_6(%arg0: i32) -> (i32, i32) {
    %c0_i32 = arith.constant 0 : i32
    %c0_i32_0 = arith.constant 0 : i32
    %c0_i32_1 = arith.constant 0 : i32
    return %c0_i32, %c0_i32_0 : i32, i32
  }
  func.func @transform_7(%arg0: i32) -> (i32, i32) {
    %c0_i32 = arith.constant 0 : i32
    %c0_i32_0 = arith.constant 0 : i32
    %c0_i32_1 = arith.constant 0 : i32
    return %c0_i32, %c0_i32_0 : i32, i32
  }
  func.func @transform_8(%arg0: i32) -> (i32, i32) {
    %c0_i32 = arith.constant 0 : i32
    %c0_i32_0 = arith.constant 0 : i32
    %c0_i32_1 = arith.constant 0 : i32
    return %c0_i32, %c0_i32_0 : i32, i32
  }
  func.func @transform_9(%arg0: i32) -> (i32, i32) {
    %c0_i32 = arith.constant 0 : i32
    %c0_i32_0 = arith.constant 0 : i32
    %c0_i32_1 = arith.constant 0 : i32
    return %c0_i32, %c0_i32_0 : i32, i32
  }
  func.func @transform_10(%arg0: i32) -> (i32, i32) {
    %c0_i32 = arith.constant 0 : i32
    %c0_i32_0 = arith.constant 0 : i32
    %c0_i32_1 = arith.constant 0 : i32
    return %c0_i32, %c0_i32_0 : i32, i32
  }
  func.func @transform_11(%arg0: i32) -> (i32, i32, i32) {
    %c0_i32 = arith.constant 0 : i32
    %c0_i32_0 = arith.constant 0 : i32
    %c0_i32_1 = arith.constant 0 : i32
    return %arg0, %c0_i32, %c0_i32_0 : i32, i32, i32
  }
}

</mosaic_0001>

<llo_original>
// kernel: tpu_custom_call.1
$region0: #{tpu_custom_call.1}
  #allocation0 [shape = 'u32[]', space=smem, size = 0x4, offset = 0x4, fixed_abs, tag = 'smem constant byte address 0x4 - core index']
  #allocation1 [shape = 'u32[144,128]{1,0:T(1,128)}', space=vmem, size = 0x12000, scoped, tag = 'internal scratch']
  %s0 = inlined_call_operand.hbm [shape: f32[2,8,256], index: 0, kind: input, shape index: {}]
  %s1 = inlined_call_operand.vmem [shape: f32[16,128], index: 1, kind: input, shape index: {}]
  %s2 = inlined_call_operand.hbm [shape: f32[16,128], index: 2, kind: input, shape index: {}]
  %s3 = inlined_call_operand.vmem [shape: f32[16,8], index: 3, kind: input, shape index: {}]
  %s4 = inlined_call_operand.vmem [shape: f32[1,256], index: 4, kind: input, shape index: {}]
  %s5 = inlined_call_operand.hbm [shape: bf16[256,512], index: 5, kind: input, shape index: {}]
  %s6 = inlined_call_operand.vmem [shape: f32[1,512], index: 6, kind: input, shape index: {}]
  %s7 = inlined_call_operand.hbm [shape: bf16[256,256], index: 7, kind: input, shape index: {}]
  %s8 = inlined_call_operand.vmem [shape: f32[1,256], index: 8, kind: input, shape index: {}]
  %s9 = inlined_call_operand.hbm [shape: bf16[256,1024], index: 9, kind: input, shape index: {}]
  %s10 = inlined_call_operand.hbm [shape: bf16[512,256], index: 10, kind: input, shape index: {}]
  %s11 = inlined_call_operand.hbm [shape: f32[2,8,256], index: 11, kind: output, shape index: {}]
  %s12 = sld [smem:[#allocation0]]
  $region101: #{tpu_custom_call.1} parent=0
    _
  %s14 = ssub.s32 1, %s12
  %s15 = scalar_select 0, %s14, %s12
  $region1: #{tpu_custom_call.1} parent=0
    #allocation2 [shape = 'u8[16384]{0}', space=vmem, size = 0x4000, scoped, tag = 'input window, operand 0']
    #allocation3 [shape = 's32[2]{0}', space=sflag, size = 0x8, scoped, tag = 'scoped memory for tpu_custom_call.1']
    #allocation4 [shape = 's32[2]{0}', space=sflag, size = 0x8, scoped, tag = 'scoped memory for tpu_custom_call.1']
    #allocation5 [shape = 'u8[8192]{0}', space=vmem, size = 0x2000, scoped, tag = 'input window, operand 2, single buffered']
    #allocation6 [shape = 's32[1]{0}', space=sflag, size = 0x4, scoped, tag = 'scoped memory for tpu_custom_call.1']
    #allocation7 [shape = 'u8[262144]{0}', space=vmem, size = 0x40000, scoped, tag = 'input window, operand 5, single buffered']
    #allocation8 [shape = 'u8[131072]{0}', space=vmem, size = 0x20000, scoped, tag = 'input window, operand 7, single buffered']
    #allocation9 [shape = 's32[1]{0}', space=sflag, size = 0x4, scoped, tag = 'scoped memory for tpu_custom_call.1']
    #allocation10 [shape = 'u8[524288]{0}', space=vmem, size = 0x80000, scoped, tag = 'input window, operand 9, single buffered']
    #allocation11 [shape = 'u8[262144]{0}', space=vmem, size = 0x40000, scoped, tag = 'input window, operand 10, single buffered']
    #allocation12 [shape = 's32[1]{0}', space=sflag, size = 0x4, scoped, tag = 'scoped memory for tpu_custom_call.1']
    #allocation13 [shape = 'u8[16384]{0}', space=vmem, size = 0x4000, scoped, tag = 'output window, operand 0']
    %16 = vsyncpa [#allocation3], 0
    %s17 = scalar_lea.sflag [#allocation3], 1
    %18 = vsyncpa %s17, 0
    %19 = vsyncpa [#allocation6], 0
    %20 = vsyncpa [#allocation9], 0
    %21 = vsyncpa [#allocation12], 0
    %22 = vsyncpa [#allocation4], 0
    %s23 = scalar_lea.sflag [#allocation4], 1
    %24 = vsyncpa %s23, 0
    loop: start=0, step=1, limit=4
    $region2: #{tpu_custom_call.1} parent=1 // loop_pre_header
      _
    $region3: #{tpu_custom_call.1} parent=1 // loop_header
      %s26 = sphi 0, %s30
      %p27 = scmp.ge.s32.totalorder %s26, 4
      %s36 = sphi 0, %s38
      %s39 = sphi 0, %s36
      %s40 = sphi 0, %s39
      %s56 = sphi 0, %s40
      %s60 = sphi 0, %s60
      %s62 = sphi 0, %s60
      %s63 = sphi 0, %s62
      %s77 = sphi 0, %s63
      %s81 = sphi 0, %s81
      %s83 = sphi 0, %s81
      %s84 = sphi 0, %s83
      %s98 = sphi 0, %s84
      %s102 = sphi 0, %s102
      %s104 = sphi 0, %s102
      %s105 = sphi 0, %s104
      %s119 = sphi 0, %s105
      %s123 = sphi 0, %s123
      %s125 = sphi 0, %s123
      %s126 = sphi 0, %s125
      %s140 = sphi 0, %s126
      %s144 = sphi 0, %s144
      %s146 = sphi 0, %s144
      %s147 = sphi 0, %s146
      %s161 = sphi 0, %s147
      %s165 = sphi 0, %s165
      %s167 = sphi 0, %s165
      %s168 = sphi 0, %s167
      %s182 = sphi 0, %s168
      %s186 = sphi 0, %s186
      %s188 = sphi 0, %s186
      %s189 = sphi 0, %s188
      %s203 = sphi 0, %s189
      %s207 = sphi 0, %s207
      %s209 = sphi 0, %s207
      %s210 = sphi 0, %s209
      %s224 = sphi 0, %s210
      %s228 = sphi 0, %s228
      %s230 = sphi 0, %s228
      %s231 = sphi 0, %s230
      %s245 = sphi 0, %s231
      %s249 = sphi 0, %s249
      %s251 = sphi 0, %s249
      %s252 = sphi 0, %s251
      %s266 = sphi 0, %s252
      %s272 = sphi 0, %s274
      %s275 = sphi 0, %s272
      %s276 = sphi 0, %s275
      %s292 = sphi 0, %s276
    $region4: #{tpu_custom_call.1} parent=1 // loop_header_branch
      %29 = sbr.rel (%p27) target = $region8
    $region5: #{tpu_custom_call.1} parent=1 // loop_body
      %s31 = ssub.s32 %s26, 1
      %s32 = ssub.s32 %s26, 2
      %s33 = sadd.s32 %s26, 1
      %s34 = ssub.s32 %s26, %s33
      %p35 = scmp.eq.s32.totalorder %s34, 0
      %s37 = sadd.s32 %s36, 1
      %s38 = scalar_select %p35, %s36, %s37
      %p41 = pneg %p35
      %p42 = scmp.eq.s32.totalorder %s26, 1
      %p43 = por %p41, %p42
      %p44 = scmp.ne.s32.totalorder %s36, %s39
      %p45 = scmp.eq.s32.totalorder %s26, 0
      %p46 = por %p44, %p45
      %p47 = scmp.ne.s32.totalorder %s36, %s39
      %p48 = scmp.eq.s32.totalorder %s31, 1
      %p49 = por %p47, %p48
      %p50 = scmp.ne.s32.totalorder %s39, %s40
      %p51 = scmp.eq.s32.totalorder %s31, 0
      %p52 = por %p50, %p51
      %p53 = scmp.ne.s32.totalorder %s39, %s40
      %p54 = scmp.eq.s32.totalorder %s32, 1
      %p55 = por %p53, %p54
      %p57 = scmp.ne.s32.totalorder %s40, %s56
      %p58 = scmp.eq.s32.totalorder %s32, 0
      %p59 = por %p57, %p58
      %s61 = sadd.s32 %s60, 1
      %p64 = scmp.eq.s32.totalorder %s26, 1
      %p65 = scmp.ne.s32.totalorder %s60, %s62
      %p66 = scmp.eq.s32.totalorder %s26, 0
      %p67 = por %p65, %p66
      %p68 = scmp.ne.s32.totalorder %s60, %s62
      %p69 = scmp.eq.s32.totalorder %s31, 1
      %p70 = por %p68, %p69
      %p71 = scmp.ne.s32.totalorder %s62, %s63
      %p72 = scmp.eq.s32.totalorder %s31, 0
      %p73 = por %p71, %p72
      %p74 = scmp.ne.s32.totalorder %s62, %s63
      %p75 = scmp.eq.s32.totalorder %s32, 1
      %p76 = por %p74, %p75
      %p78 = scmp.ne.s32.totalorder %s63, %s77
      %p79 = scmp.eq.s32.totalorder %s32, 0
      %p80 = por %p78, %p79
      %s82 = sadd.s32 %s81, 1
      %p85 = scmp.eq.s32.totalorder %s26, 1
      %p86 = scmp.ne.s32.totalorder %s81, %s83
      %p87 = scmp.eq.s32.totalorder %s26, 0
      %p88 = por %p86, %p87
      %p89 = scmp.ne.s32.totalorder %s81, %s83
      %p90 = scmp.eq.s32.totalorder %s31, 1
      %p91 = por %p89, %p90
      %p92 = scmp.ne.s32.totalorder %s83, %s84
      %p93 = scmp.eq.s32.totalorder %s31, 0
      %p94 = por %p92, %p93
      %p95 = scmp.ne.s32.totalorder %s83, %s84
      %p96 = scmp.eq.s32.totalorder %s32, 1
      %p97 = por %p95, %p96
      %p99 = scmp.ne.s32.totalorder %s84, %s98
      %p100 = scmp.eq.s32.totalorder %s32, 0
      %p101 = por %p99, %p100
      %s103 = sadd.s32 %s102, 1
      %p106 = scmp.eq.s32.totalorder %s26, 1
      %p107 = scmp.ne.s32.totalorder %s102, %s104
      %p108 = scmp.eq.s32.totalorder %s26, 0
      %p109 = por %p107, %p108
      %p110 = scmp.ne.s32.totalorder %s102, %s104
      %p111 = scmp.eq.s32.totalorder %s31, 1
      %p112 = por %p110, %p111
      %p113 = scmp.ne.s32.totalorder %s104, %s105
      %p114 = scmp.eq.s32.totalorder %s31, 0
      %p115 = por %p113, %p114
      %p116 = scmp.ne.s32.totalorder %s104, %s105
      %p117 = scmp.eq.s32.totalorder %s32, 1
      %p118 = por %p116, %p117
      %p120 = scmp.ne.s32.totalorder %s105, %s119
      %p121 = scmp.eq.s32.totalorder %s32, 0
      %p122 = por %p120, %p121
      %s124 = sadd.s32 %s123, 1
      %p127 = scmp.eq.s32.totalorder %s26, 1
      %p128 = scmp.ne.s32.totalorder %s123, %s125
      %p129 = scmp.eq.s32.totalorder %s26, 0
      %p130 = por %p128, %p129
      %p131 = scmp.ne.s32.totalorder %s123, %s125
      %p132 = scmp.eq.s32.totalorder %s31, 1
      %p133 = por %p131, %p132
      %p134 = scmp.ne.s32.totalorder %s125, %s126
      %p135 = scmp.eq.s32.totalorder %s31, 0
      %p136 = por %p134, %p135
      %p137 = scmp.ne.s32.totalorder %s125, %s126
      %p138 = scmp.eq.s32.totalorder %s32, 1
      %p139 = por %p137, %p138
      %p141 = scmp.ne.s32.totalorder %s126, %s140
      %p142 = scmp.eq.s32.totalorder %s32, 0
      %p143 = por %p141, %p142
      %s145 = sadd.s32 %s144, 1
      %p148 = scmp.eq.s32.totalorder %s26, 1
      %p149 = scmp.ne.s32.totalorder %s144, %s146
      %p150 = scmp.eq.s32.totalorder %s26, 0
      %p151 = por %p149, %p150
      %p152 = scmp.ne.s32.totalorder %s144, %s146
      %p153 = scmp.eq.s32.totalorder %s31, 1
      %p154 = por %p152, %p153
      %p155 = scmp.ne.s32.totalorder %s146, %s147
      %p156 = scmp.eq.s32.totalorder %s31, 0
      %p157 = por %p155, %p156
      %p158 = scmp.ne.s32.totalorder %s146, %s147
      %p159 = scmp.eq.s32.totalorder %s32, 1
      %p160 = por %p158, %p159
      %p162 = scmp.ne.s32.totalorder %s147, %s161
      %p163 = scmp.eq.s32.totalorder %s32, 0
      %p164 = por %p162, %p163
      %s166 = sadd.s32 %s165, 1
      %p169 = scmp.eq.s32.totalorder %s26, 1
      %p170 = scmp.ne.s32.totalorder %s165, %s167
      %p171 = scmp.eq.s32.totalorder %s26, 0
      %p172 = por %p170, %p171
      %p173 = scmp.ne.s32.totalorder %s165, %s167
      %p174 = scmp.eq.s32.totalorder %s31, 1
      %p175 = por %p173, %p174
      %p176 = scmp.ne.s32.totalorder %s167, %s168
      %p177 = scmp.eq.s32.totalorder %s31, 0
      %p178 = por %p176, %p177
      %p179 = scmp.ne.s32.totalorder %s167, %s168
      %p180 = scmp.eq.s32.totalorder %s32, 1
      %p181 = por %p179, %p180
      %p183 = scmp.ne.s32.totalorder %s168, %s182
      %p184 = scmp.eq.s32.totalorder %s32, 0
      %p185 = por %p183, %p184
      %s187 = sadd.s32 %s186, 1
      %p190 = scmp.eq.s32.totalorder %s26, 1
      %p191 = scmp.ne.s32.totalorder %s186, %s188
      %p192 = scmp.eq.s32.totalorder %s26, 0
      %p193 = por %p191, %p192
      %p194 = scmp.ne.s32.totalorder %s186, %s188
      %p195 = scmp.eq.s32.totalorder %s31, 1
      %p196 = por %p194, %p195
      %p197 = scmp.ne.s32.totalorder %s188, %s189
      %p198 = scmp.eq.s32.totalorder %s31, 0
      %p199 = por %p197, %p198
      %p200 = scmp.ne.s32.totalorder %s188, %s189
      %p201 = scmp.eq.s32.totalorder %s32, 1
      %p202 = por %p200, %p201
      %p204 = scmp.ne.s32.totalorder %s189, %s203
      %p205 = scmp.eq.s32.totalorder %s32, 0
      %p206 = por %p204, %p205
      %s208 = sadd.s32 %s207, 1
      %p211 = scmp.eq.s32.totalorder %s26, 1
      %p212 = scmp.ne.s32.totalorder %s207, %s209
      %p213 = scmp.eq.s32.totalorder %s26, 0
      %p214 = por %p212, %p213
      %p215 = scmp.ne.s32.totalorder %s207, %s209
      %p216 = scmp.eq.s32.totalorder %s31, 1
      %p217 = por %p215, %p216
      %p218 = scmp.ne.s32.totalorder %s209, %s210
      %p219 = scmp.eq.s32.totalorder %s31, 0
      %p220 = por %p218, %p219
      %p221 = scmp.ne.s32.totalorder %s209, %s210
      %p222 = scmp.eq.s32.totalorder %s32, 1
      %p223 = por %p221, %p222
      %p225 = scmp.ne.s32.totalorder %s210, %s224
      %p226 = scmp.eq.s32.totalorder %s32, 0
      %p227 = por %p225, %p226
      %s229 = sadd.s32 %s228, 1
      %p232 = scmp.eq.s32.totalorder %s26, 1
      %p233 = scmp.ne.s32.totalorder %s228, %s230
      %p234 = scmp.eq.s32.totalorder %s26, 0
      %p235 = por %p233, %p234
      %p236 = scmp.ne.s32.totalorder %s228, %s230
      %p237 = scmp.eq.s32.totalorder %s31, 1
      %p238 = por %p236, %p237
      %p239 = scmp.ne.s32.totalorder %s230, %s231
      %p240 = scmp.eq.s32.totalorder %s31, 0
      %p241 = por %p239, %p240
      %p242 = scmp.ne.s32.totalorder %s230, %s231
      %p243 = scmp.eq.s32.totalorder %s32, 1
      %p244 = por %p242, %p243
      %p246 = scmp.ne.s32.totalorder %s231, %s245
      %p247 = scmp.eq.s32.totalorder %s32, 0
      %p248 = por %p246, %p247
      %s250 = sadd.s32 %s249, 1
      %p253 = scmp.eq.s32.totalorder %s26, 1
      %p254 = scmp.ne.s32.totalorder %s249, %s251
      %p255 = scmp.eq.s32.totalorder %s26, 0
      %p256 = por %p254, %p255
      %p257 = scmp.ne.s32.totalorder %s249, %s251
      %p258 = scmp.eq.s32.totalorder %s31, 1
      %p259 = por %p257, %p258
      %p260 = scmp.ne.s32.totalorder %s251, %s252
      %p261 = scmp.eq.s32.totalorder %s31, 0
      %p262 = por %p260, %p261
      %p263 = scmp.ne.s32.totalorder %s251, %s252
      %p264 = scmp.eq.s32.totalorder %s32, 1
      %p265 = por %p263, %p264
      %p267 = scmp.ne.s32.totalorder %s252, %s266
      %p268 = scmp.eq.s32.totalorder %s32, 0
      %p269 = por %p267, %p268
      %s270 = ssub.s32 %s26, %s33
      %p271 = scmp.eq.s32.totalorder %s270, 0
      %s273 = sadd.s32 %s272, 1
      %s274 = scalar_select %p271, %s272, %s273
      %p277 = pneg %p271
      %p278 = scmp.eq.s32.totalorder %s26, 1
      %p279 = por %p277, %p278
      %p280 = scmp.ne.s32.totalorder %s272, %s275
      %p281 = scmp.eq.s32.totalorder %s26, 0
      %p282 = por %p280, %p281
      %p283 = scmp.ne.s32.totalorder %s272, %s275
      %p284 = scmp.eq.s32.totalorder %s31, 1
      %p285 = por %p283, %p284
      %p286 = scmp.ne.s32.totalorder %s275, %s276
      %p287 = scmp.eq.s32.totalorder %s31, 0
      %p288 = por %p286, %p287
      %p289 = scmp.ne.s32.totalorder %s275, %s276
      %p290 = scmp.eq.s32.totalorder %s32, 1
      %p291 = por %p289, %p290
      %p293 = scmp.ne.s32.totalorder %s276, %s292
      %p294 = scmp.eq.s32.totalorder %s32, 0
      %p295 = por %p293, %p294
      %p296 = scmp.le.s32.totalorder 1, %s26
      %p297 = scmp.lt.s32.totalorder %s26, 3
      %p298 = pnand %p296, %p297
      %p299 = pneg %p298
      // Predicated region
      $region9: #{tpu_custom_call.1} parent=5 // pred_check
        _
      $region10: #{tpu_custom_call.1} parent=5 // pred_check_branch
        %301 = sbr.rel (%p298) target = $region12
      $region11: #{tpu_custom_call.1} parent=5 // pred_region
        %s302 = ssub.s32 %s26, 1
        // Predicated region
        $region13: #{tpu_custom_call.1} parent=11 // pred_check
          %p303 = pneg %p73
        $region14: #{tpu_custom_call.1} parent=11 // pred_check_branch
          %305 = sbr.rel (%p303) target = $region16
        $region15: #{tpu_custom_call.1} parent=11 // pred_region
          _
        $region16: #{tpu_custom_call.1} parent=11 // pred_fallthru
          _
        // Predicated region
        $region17: #{tpu_custom_call.1} parent=11 // pred_check
          %p306 = pneg %p94
        $region18: #{tpu_custom_call.1} parent=11 // pred_check_branch
          %308 = sbr.rel (%p306) target = $region20
        $region19: #{tpu_custom_call.1} parent=11 // pred_region
          %s310 = ssub.s32 256, 256
          %311 = vsyncadd [#allocation6], %s310
          %s312 = sshll.u32 [#allocation5], 4
          %s313 = int_to_ptr.vmem [resolvable:$true] %s312
          %318 = dma.hbm_to_vmem [thread:$0]  %s2, 256, %s313, [#allocation6], 128, 128, 8
        $region20: #{tpu_custom_call.1} parent=11 // pred_fallthru
          _
        // Predicated region
        $region21: #{tpu_custom_call.1} parent=11 // pred_check
          %p319 = pneg %p115
        $region22: #{tpu_custom_call.1} parent=11 // pred_check_branch
          %321 = sbr.rel (%p319) target = $region24
        $region23: #{tpu_custom_call.1} parent=11 // pred_region
          _
        $region24: #{tpu_custom_call.1} parent=11 // pred_fallthru
          _
        // Predicated region
        $region25: #{tpu_custom_call.1} parent=11 // pred_check
          %p322 = pneg %p136
        $region26: #{tpu_custom_call.1} parent=11 // pred_check_branch
          %324 = sbr.rel (%p322) target = $region28
        $region27: #{tpu_custom_call.1} parent=11 // pred_region
          _
        $region28: #{tpu_custom_call.1} parent=11 // pred_fallthru
          _
        // Predicated region
        $region29: #{tpu_custom_call.1} parent=11 // pred_check
          %p325 = pneg %p157
        $region30: #{tpu_custom_call.1} parent=11 // pred_check_branch
          %327 = sbr.rel (%p325) target = $region32
        $region31: #{tpu_custom_call.1} parent=11 // pred_region
          %s329 = ssub.s32 8192, 8192
          %330 = vsyncadd [#allocation6], %s329
          %s331 = sshll.u32 [#allocation7], 4
          %s332 = int_to_ptr.vmem [resolvable:$true] %s331
          %337 = dma.hbm_to_vmem [thread:$0]  %s5, 8192, %s332, [#allocation6], 256, 256, 16
        $region32: #{tpu_custom_call.1} parent=11 // pred_fallthru
          _
        // Predicated region
        $region33: #{tpu_custom_call.1} parent=11 // pred_check
          %p338 = pneg %p178
        $region34: #{tpu_custom_call.1} parent=11 // pred_check_branch
          %340 = sbr.rel (%p338) target = $region36
        $region35: #{tpu_custom_call.1} parent=11 // pred_region
          _
        $region36: #{tpu_custom_call.1} parent=11 // pred_fallthru
          _
        // Predicated region
        $region37: #{tpu_custom_call.1} parent=11 // pred_check
          %p341 = pneg %p199
        $region38: #{tpu_custom_call.1} parent=11 // pred_check_branch
          %343 = sbr.rel (%p341) target = $region40
        $region39: #{tpu_custom_call.1} parent=11 // pred_region
          %s345 = ssub.s32 4096, 4096
          %346 = vsyncadd [#allocation9], %s345
          %s347 = sshll.u32 [#allocation8], 4
          %s348 = int_to_ptr.vmem [resolvable:$true] %s347
          %353 = dma.hbm_to_vmem [thread:$0]  %s7, 4096, %s348, [#allocation9], 128, 128, 8
        $region40: #{tpu_custom_call.1} parent=11 // pred_fallthru
          _
        // Predicated region
        $region41: #{tpu_custom_call.1} parent=11 // pred_check
          %p354 = pneg %p220
        $region42: #{tpu_custom_call.1} parent=11 // pred_check_branch
          %356 = sbr.rel (%p354) target = $region44
        $region43: #{tpu_custom_call.1} parent=11 // pred_region
          _
        $region44: #{tpu_custom_call.1} parent=11 // pred_fallthru
          _
        // Predicated region
        $region45: #{tpu_custom_call.1} parent=11 // pred_check
          %p357 = pneg %p241
        $region46: #{tpu_custom_call.1} parent=11 // pred_check_branch
          %359 = sbr.rel (%p357) target = $region48
        $region47: #{tpu_custom_call.1} parent=11 // pred_region
          %s361 = ssub.s32 16384, 16384
          %362 = vsyncadd [#allocation9], %s361
          %s363 = sshll.u32 [#allocation10], 4
          %s364 = int_to_ptr.vmem [resolvable:$true] %s363
          %369 = dma.hbm_to_vmem [thread:$0]  %s9, 16384, %s364, [#allocation9], 512, 512, 32
        $region48: #{tpu_custom_call.1} parent=11 // pred_fallthru
          _
        // Predicated region
        $region49: #{tpu_custom_call.1} parent=11 // pred_check
          %p370 = pneg %p262
        $region50: #{tpu_custom_call.1} parent=11 // pred_check_branch
          %372 = sbr.rel (%p370) target = $region52
        $region51: #{tpu_custom_call.1} parent=11 // pred_region
          %s374 = ssub.s32 8192, 8192
          %375 = vsyncadd [#allocation12], %s374
          %s376 = sshll.u32 [#allocation11], 4
          %s377 = int_to_ptr.vmem [resolvable:$true] %s376
          %382 = dma.hbm_to_vmem [thread:$0]  %s10, 8192, %s377, [#allocation12], 128, 128, 8
        $region52: #{tpu_custom_call.1} parent=11 // pred_fallthru
          _
      $region12: #{tpu_custom_call.1} parent=5 // pred_fallthru
        _
      %p383 = scmp.lt.s32.totalorder %s26, 2
      // Predicated region
      $region53: #{tpu_custom_call.1} parent=5 // pred_check
        %p384 = pneg %p383
      $region54: #{tpu_custom_call.1} parent=5 // pred_check_branch
        %386 = sbr.rel (%p384) target = $region56
      $region55: #{tpu_custom_call.1} parent=5 // pred_region
        // Predicated region
        $region57: #{tpu_custom_call.1} parent=55 // pred_check
          %p387 = pneg %p46
        $region58: #{tpu_custom_call.1} parent=55 // pred_check_branch
          %389 = sbr.rel (%p387) target = $region60
        $region59: #{tpu_custom_call.1} parent=55 // pred_region
          %s390 = sand.u32 %s36, 1
          %s391 = scalar_lea.sflag [#allocation3], %s390
          %s392 = sand.u32 %s36, 1
          %s393 = smul.addr %s392, 16
          %s394 = scalar_lea.vmem [#allocation2], %s393
          %s396 = ssub.s32 256, 256
          %397 = vsyncadd %s391, %s396
          %s398 = smul.addr %s26, 2
          %s399 = smul.addr %s398, 128
          %s400 = scalar_lea.hbm %s0, %s399
          %s402 = sshll.u32 %s394, 4
          %s403 = int_to_ptr.vmem [resolvable:$true] %s402
          %405 = dma.hbm_to_vmem [thread:$0]  %s400, 256, %s403, %s391
        $region60: #{tpu_custom_call.1} parent=55 // pred_fallthru
          _
      $region56: #{tpu_custom_call.1} parent=5 // pred_fallthru
        _
      %p406 = scmp.le.s32.totalorder 1, %s26
      %p407 = scmp.lt.s32.totalorder %s26, 3
      %p408 = pnand %p406, %p407
      %p409 = pneg %p408
      // Predicated region
      $region61: #{tpu_custom_call.1} parent=5 // pred_check
        _
      $region62: #{tpu_custom_call.1} parent=5 // pred_check_branch
        %411 = sbr.rel (%p408) target = $region64
      $region63: #{tpu_custom_call.1} parent=5 // pred_region
        %s412 = ssub.s32 %s26, 1
        %s413 = sand.u32 %s39, 1
        %s414 = scalar_lea.sflag [#allocation3], %s413
        %s415 = sand.u32 %s39, 1
        %s416 = smul.addr %s415, 16
        %s417 = scalar_lea.vmem [#allocation2], %s416
        // Predicated region
        $region65: #{tpu_custom_call.1} parent=63 // pred_check
          %p418 = pneg %p52
        $region66: #{tpu_custom_call.1} parent=63 // pred_check_branch
          %420 = sbr.rel (%p418) target = $region68
        $region67: #{tpu_custom_call.1} parent=63 // pred_region
          %421 = dma.done %s414, 256
        $region68: #{tpu_custom_call.1} parent=63 // pred_fallthru
          _
        // Predicated region
        $region69: #{tpu_custom_call.1} parent=63 // pred_check
          %p422 = pneg %p94
        $region70: #{tpu_custom_call.1} parent=63 // pred_check_branch
          %424 = sbr.rel (%p422) target = $region72
        $region71: #{tpu_custom_call.1} parent=63 // pred_region
          %425 = dma.done [#allocation6], 256
        $region72: #{tpu_custom_call.1} parent=63 // pred_fallthru
          _
        // Predicated region
        $region73: #{tpu_custom_call.1} parent=63 // pred_check
          %p426 = pneg %p157
        $region74: #{tpu_custom_call.1} parent=63 // pred_check_branch
          %428 = sbr.rel (%p426) target = $region76
        $region75: #{tpu_custom_call.1} parent=63 // pred_region
          %429 = dma.done [#allocation6], 8192
        $region76: #{tpu_custom_call.1} parent=63 // pred_fallthru
          _
        // Predicated region
        $region77: #{tpu_custom_call.1} parent=63 // pred_check
          %p430 = pneg %p199
        $region78: #{tpu_custom_call.1} parent=63 // pred_check_branch
          %432 = sbr.rel (%p430) target = $region80
        $region79: #{tpu_custom_call.1} parent=63 // pred_region
          %433 = dma.done [#allocation9], 4096
        $region80: #{tpu_custom_call.1} parent=63 // pred_fallthru
          _
        // Predicated region
        $region81: #{tpu_custom_call.1} parent=63 // pred_check
          %p434 = pneg %p241
        $region82: #{tpu_custom_call.1} parent=63 // pred_check_branch
          %436 = sbr.rel (%p434) target = $region84
        $region83: #{tpu_custom_call.1} parent=63 // pred_region
          %437 = dma.done [#allocation9], 16384
        $region84: #{tpu_custom_call.1} parent=63 // pred_fallthru
          _
        // Predicated region
        $region85: #{tpu_custom_call.1} parent=63 // pred_check
          %p438 = pneg %p262
        $region86: #{tpu_custom_call.1} parent=63 // pred_check_branch
          %440 = sbr.rel (%p438) target = $region88
        $region87: #{tpu_custom_call.1} parent=63 // pred_region
          %441 = dma.done [#allocation12], 8192
        $region88: #{tpu_custom_call.1} parent=63 // pred_fallthru
          _
        %s442 = sand.u32 %s39, 1
        %s443 = scalar_lea.sflag [#allocation3], %s442
        %s444 = sand.u32 %s39, 1
        %s445 = smul.addr %s444, 16
        %s446 = scalar_lea.vmem [#allocation2], %s445
        %p447 = pneg %p52
        %p448 = pneg %p49
        %p449 = pneg %p73
        %p450 = pneg %p70
        %p451 = pneg %p94
        %p452 = pneg %p91
        %p453 = pneg %p115
        %p454 = pneg %p112
        %p455 = pneg %p136
        %p456 = pneg %p133
        %p457 = pneg %p157
        %p458 = pneg %p154
        %p459 = pneg %p178
        %p460 = pneg %p175
        %p461 = pneg %p199
        %p462 = pneg %p196
        %p463 = pneg %p220
        %p464 = pneg %p217
        %p465 = pneg %p241
        %p466 = pneg %p238
        %p467 = pneg %p262
        %p468 = pneg %p259
        %p469 = pneg %p288
        %p470 = pneg %p285
        %s471 = sand.u32 %s275, 1
        %s472 = scalar_lea.sflag [#allocation4], %s471
        %s473 = sand.u32 %s275, 1
        %s474 = smul.addr %s473, 16
        %s475 = scalar_lea.vmem [#allocation13], %s474
        %v477 = vld [vmem:[%s417] sm:$0xff]
        %v478 = vld [vmem:[%s417 + $0x8] sm:$0xff]
        %v479 = vld [vmem:[%s4] sm:$0x3]
        %v480 = vmul.f32 %v477, %v477
        %v481 = vmul.f32 %v478, %v478
        %v482 = vadd.f32 %v480, %v481
        %483 = vadd.xlane.f32.xlu0 %v482
        %v484 = vpop.xlane.xlu0 %483
        %v485 = vrcp.pop 256.0
        %v486 = vmul.f32 %v484, %v485
        %v487 = vadd.f32 %v486, 1e-06
        %v488 = vrsqrt.pop %v487
        %v489 = vmul.f32 %v477, %v488
        %v490 = vmul.f32 %v478, %v488
        %v492 = vlaneseq
        %v493 = vshrl.u32 %v492, 7
        %v494 = vsub.s32 0, %v493
        %v495 = vrot.slane %v479, %v494
        %v496 = vlaneseq
        %v497 = vshrl.u32 %v496, 7
        %v498 = vsub.s32 1, %v497
        %v499 = vrot.slane %v479, %v498
        %v502 = vmul.f32 %v489, %v495
        %v503 = vmul.f32 %v490, %v499
        %v504 = vpack.c.bf16 %v502, %v502
        %v505 = vpack.c.bf16 %v503, %v503
        %v506 = vld [vmem:[#allocation7] sm:$0xff]
        %v507 = vld [vmem:[#allocation7 + $0x8] sm:$0xff]
        %v508 = vld [vmem:[#allocation7 + $0x10] sm:$0xff]
        %v509 = vld [vmem:[#allocation7 + $0x18] sm:$0xff]
        %v510 = vld [vmem:[#allocation7 + $0x20] sm:$0xff]
        %v511 = vld [vmem:[#allocation7 + $0x28] sm:$0xff]
        %v512 = vld [vmem:[#allocation7 + $0x30] sm:$0xff]
        %v513 = vld [vmem:[#allocation7 + $0x38] sm:$0xff]
        %v514 = vld [vmem:[#allocation7 + $0x40] sm:$0xff]
        %v515 = vld [vmem:[#allocation7 + $0x48] sm:$0xff]
        %v516 = vld [vmem:[#allocation7 + $0x50] sm:$0xff]
        %v517 = vld [vmem:[#allocation7 + $0x58] sm:$0xff]
        %v518 = vld [vmem:[#allocation7 + $0x60] sm:$0xff]
        %v519 = vld [vmem:[#allocation7 + $0x68] sm:$0xff]
        %v520 = vld [vmem:[#allocation7 + $0x70] sm:$0xff]
        %v521 = vld [vmem:[#allocation7 + $0x78] sm:$0xff]
        %v522 = vld [vmem:[#allocation7 + $0x80] sm:$0xff]
        %v523 = vld [vmem:[#allocation7 + $0x88] sm:$0xff]
        %v524 = vld [vmem:[#allocation7 + $0x90] sm:$0xff]
        %v525 = vld [vmem:[#allocation7 + $0x98] sm:$0xff]
        %v526 = vld [vmem:[#allocation7 + $0xa0] sm:$0xff]
        %v527 = vld [vmem:[#allocation7 + $0xa8] sm:$0xff]
        %v528 = vld [vmem:[#allocation7 + $0xb0] sm:$0xff]
        %v529 = vld [vmem:[#allocation7 + $0xb8] sm:$0xff]
        %v530 = vld [vmem:[#allocation7 + $0xc0] sm:$0xff]
        %v531 = vld [vmem:[#allocation7 + $0xc8] sm:$0xff]
        %v532 = vld [vmem:[#allocation7 + $0xd0] sm:$0xff]
        %v533 = vld [vmem:[#allocation7 + $0xd8] sm:$0xff]
        %v534 = vld [vmem:[#allocation7 + $0xe0] sm:$0xff]
        %v535 = vld [vmem:[#allocation7 + $0xe8] sm:$0xff]
        %v536 = vld [vmem:[#allocation7 + $0xf0] sm:$0xff]
        %v537 = vld [vmem:[#allocation7 + $0xf8] sm:$0xff]
        %v538 = vld [vmem:[#allocation7 + $0x100] sm:$0xff]
        %v539 = vld [vmem:[#allocation7 + $0x108] sm:$0xff]
        %v540 = vld [vmem:[#allocation7 + $0x110] sm:$0xff]
        %v541 = vld [vmem:[#allocation7 + $0x118] sm:$0xff]
        %v542 = vld [vmem:[#allocation7 + $0x120] sm:$0xff]
        %v543 = vld [vmem:[#allocation7 + $0x128] sm:$0xff]
        %v544 = vld [vmem:[#allocation7 + $0x130] sm:$0xff]
        %v545 = vld [vmem:[#allocation7 + $0x138] sm:$0xff]
        %v546 = vld [vmem:[#allocation7 + $0x140] sm:$0xff]
        %v547 = vld [vmem:[#allocation7 + $0x148] sm:$0xff]
        %v548 = vld [vmem:[#allocation7 + $0x150] sm:$0xff]
        %v549 = vld [vmem:[#allocation7 + $0x158] sm:$0xff]
        %v550 = vld [vmem:[#allocation7 + $0x160] sm:$0xff]
        %v551 = vld [vmem:[#allocation7 + $0x168] sm:$0xff]
        %v552 = vld [vmem:[#allocation7 + $0x170] sm:$0xff]
        %v553 = vld [vmem:[#allocation7 + $0x178] sm:$0xff]
        %v554 = vld [vmem:[#allocation7 + $0x180] sm:$0xff]
        %v555 = vld [vmem:[#allocation7 + $0x188] sm:$0xff]
        %v556 = vld [vmem:[#allocation7 + $0x190] sm:$0xff]
        %v557 = vld [vmem:[#allocation7 + $0x198] sm:$0xff]
        %v558 = vld [vmem:[#allocation7 + $0x1a0] sm:$0xff]
        %v559 = vld [vmem:[#allocation7 + $0x1a8] sm:$0xff]
        %v560 = vld [vmem:[#allocation7 + $0x1b0] sm:$0xff]
        %v561 = vld [vmem:[#allocation7 + $0x1b8] sm:$0xff]
        %v562 = vld [vmem:[#allocation7 + $0x1c0] sm:$0xff]
        %v563 = vld [vmem:[#allocation7 + $0x1c8] sm:$0xff]
        %v564 = vld [vmem:[#allocation7 + $0x1d0] sm:$0xff]
        %v565 = vld [vmem:[#allocation7 + $0x1d8] sm:$0xff]
        %v566 = vld [vmem:[#allocation7 + $0x1e0] sm:$0xff]
        %v567 = vld [vmem:[#allocation7 + $0x1e8] sm:$0xff]
        %v568 = vld [vmem:[#allocation7 + $0x1f0] sm:$0xff]
        %v569 = vld [vmem:[#allocation7 + $0x1f8] sm:$0xff]
        %v570 = vld [vmem:[%s6] sm:$0xf]
        %v572 = vlaneseq
        %v573 = vshrl.u32 %v572, 7
        %v574 = vsub.s32 0, %v573
        %v575 = vrot.slane %v570, %v574
        %v576 = vlaneseq
        %v577 = vshrl.u32 %v576, 7
        %v578 = vsub.s32 1, %v577
        %v579 = vrot.slane %v570, %v578
        %v580 = vlaneseq
        %v581 = vshrl.u32 %v580, 7
        %v582 = vsub.s32 2, %v581
        %v583 = vrot.slane %v570, %v582
        %v584 = vlaneseq
        %v585 = vshrl.u32 %v584, 7
        %v586 = vsub.s32 3, %v585
        %v587 = vrot.slane %v570, %v586
        %v656 = vunpack.c.l.b16 %v506
        %v657 = vunpack.c.h.b16 %v506
        %v658 = vunpack.c.l.b16 %v507
        %v659 = vunpack.c.h.b16 %v507
        %v660 = vunpack.c.l.b16 %v508
        %v661 = vunpack.c.h.b16 %v508
        %v662 = vunpack.c.l.b16 %v509
        %v663 = vunpack.c.h.b16 %v509
        %v664 = vunpack.c.l.b16 %v510
        %v665 = vunpack.c.h.b16 %v510
        %v666 = vunpack.c.l.b16 %v511
        %v667 = vunpack.c.h.b16 %v511
        %v668 = vunpack.c.l.b16 %v512
        %v669 = vunpack.c.h.b16 %v512
        %v670 = vunpack.c.l.b16 %v513
        %v671 = vunpack.c.h.b16 %v513
        %v672 = vunpack.c.l.b16 %v514
        %v673 = vunpack.c.h.b16 %v514
        %v674 = vunpack.c.l.b16 %v515
        %v675 = vunpack.c.h.b16 %v515
        %v676 = vunpack.c.l.b16 %v516
        %v677 = vunpack.c.h.b16 %v516
        %v678 = vunpack.c.l.b16 %v517
        %v679 = vunpack.c.h.b16 %v517
        %v680 = vunpack.c.l.b16 %v518
        %v681 = vunpack.c.h.b16 %v518
        %v682 = vunpack.c.l.b16 %v519
        %v683 = vunpack.c.h.b16 %v519
        %v684 = vunpack.c.l.b16 %v520
        %v685 = vunpack.c.h.b16 %v520
        %v686 = vunpack.c.l.b16 %v521
        %v687 = vunpack.c.h.b16 %v521
        %v688 = vunpack.c.l.b16 %v522
        %v689 = vunpack.c.h.b16 %v522
        %v690 = vunpack.c.l.b16 %v523
        %v691 = vunpack.c.h.b16 %v523
        %v692 = vunpack.c.l.b16 %v524
        %v693 = vunpack.c.h.b16 %v524
        %v694 = vunpack.c.l.b16 %v525
        %v695 = vunpack.c.h.b16 %v525
        %v696 = vunpack.c.l.b16 %v526
        %v697 = vunpack.c.h.b16 %v526
        %v698 = vunpack.c.l.b16 %v527
        %v699 = vunpack.c.h.b16 %v527
        %v700 = vunpack.c.l.b16 %v528
        %v701 = vunpack.c.h.b16 %v528
        %v702 = vunpack.c.l.b16 %v529
        %v703 = vunpack.c.h.b16 %v529
        %v704 = vunpack.c.l.b16 %v530
        %v705 = vunpack.c.h.b16 %v530
        %v706 = vunpack.c.l.b16 %v531
        %v707 = vunpack.c.h.b16 %v531
        %v708 = vunpack.c.l.b16 %v532
        %v709 = vunpack.c.h.b16 %v532
        %v710 = vunpack.c.l.b16 %v533
        %v711 = vunpack.c.h.b16 %v533
        %v712 = vunpack.c.l.b16 %v534
        %v713 = vunpack.c.h.b16 %v534
        %v714 = vunpack.c.l.b16 %v535
        %v715 = vunpack.c.h.b16 %v535
        %v716 = vunpack.c.l.b16 %v536
        %v717 = vunpack.c.h.b16 %v536
        %v718 = vunpack.c.l.b16 %v537
        %v719 = vunpack.c.h.b16 %v537
        %v720 = vunpack.c.l.b16 %v538
        %v721 = vunpack.c.h.b16 %v538
        %v722 = vunpack.c.l.b16 %v539
        %v723 = vunpack.c.h.b16 %v539
        %v724 = vunpack.c.l.b16 %v540
        %v725 = vunpack.c.h.b16 %v540
        %v726 = vunpack.c.l.b16 %v541
        %v727 = vunpack.c.h.b16 %v541
        %v728 = vunpack.c.l.b16 %v542
        %v729 = vunpack.c.h.b16 %v542
        %v730 = vunpack.c.l.b16 %v543
        %v731 = vunpack.c.h.b16 %v543
        %v732 = vunpack.c.l.b16 %v544
        %v733 = vunpack.c.h.b16 %v544
        %v734 = vunpack.c.l.b16 %v545
        %v735 = vunpack.c.h.b16 %v545
        %v736 = vunpack.c.l.b16 %v546
        %v737 = vunpack.c.h.b16 %v546
        %v738 = vunpack.c.l.b16 %v547
        %v739 = vunpack.c.h.b16 %v547
        %v740 = vunpack.c.l.b16 %v548
        %v741 = vunpack.c.h.b16 %v548
        %v742 = vunpack.c.l.b16 %v549
        %v743 = vunpack.c.h.b16 %v549
        %v744 = vunpack.c.l.b16 %v550
        %v745 = vunpack.c.h.b16 %v550
        %v746 = vunpack.c.l.b16 %v551
        %v747 = vunpack.c.h.b16 %v551
        %v748 = vunpack.c.l.b16 %v552
        %v749 = vunpack.c.h.b16 %v552
        %v750 = vunpack.c.l.b16 %v553
        %v751 = vunpack.c.h.b16 %v553
        %v752 = vunpack.c.l.b16 %v554
        %v753 = vunpack.c.h.b16 %v554
        %v754 = vunpack.c.l.b16 %v555
        %v755 = vunpack.c.h.b16 %v555
        %v756 = vunpack.c.l.b16 %v556
        %v757 = vunpack.c.h.b16 %v556
        %v758 = vunpack.c.l.b16 %v557
        %v759 = vunpack.c.h.b16 %v557
        %v760 = vunpack.c.l.b16 %v558
        %v761 = vunpack.c.h.b16 %v558
        %v762 = vunpack.c.l.b16 %v559
        %v763 = vunpack.c.h.b16 %v559
        %v764 = vunpack.c.l.b16 %v560
        %v765 = vunpack.c.h.b16 %v560
        %v766 = vunpack.c.l.b16 %v561
        %v767 = vunpack.c.h.b16 %v561
        %v768 = vunpack.c.l.b16 %v562
        %v769 = vunpack.c.h.b16 %v562
        %v770 = vunpack.c.l.b16 %v563
        %v771 = vunpack.c.h.b16 %v563
        %v772 = vunpack.c.l.b16 %v564
        %v773 = vunpack.c.h.b16 %v564
        %v774 = vunpack.c.l.b16 %v565
        %v775 = vunpack.c.h.b16 %v565
        %v776 = vunpack.c.l.b16 %v566
        %v777 = vunpack.c.h.b16 %v566
        %v778 = vunpack.c.l.b16 %v567
        %v779 = vunpack.c.h.b16 %v567
        %v780 = vunpack.c.l.b16 %v568
        %v781 = vunpack.c.h.b16 %v568
        %v782 = vunpack.c.l.b16 %v569
        %v783 = vunpack.c.h.b16 %v569
        %v784 = vpack.c.b16 %v660, %v656
        %v785 = vpack.c.b16 %v661, %v657
        %v786 = vpack.c.b16 %v662, %v658
        %v787 = vpack.c.b16 %v663, %v659
        %v788 = vpack.c.b16 %v668, %v664
        %v789 = vpack.c.b16 %v669, %v665
        %v790 = vpack.c.b16 %v670, %v666
        %v791 = vpack.c.b16 %v671, %v667
        %v792 = vpack.c.b16 %v676, %v672
        %v793 = vpack.c.b16 %v677, %v673
        %v794 = vpack.c.b16 %v678, %v674
        %v795 = vpack.c.b16 %v679, %v675
        %v796 = vpack.c.b16 %v684, %v680
        %v797 = vpack.c.b16 %v685, %v681
        %v798 = vpack.c.b16 %v686, %v682
        %v799 = vpack.c.b16 %v687, %v683
        %v800 = vpack.c.b16 %v692, %v688
        %v801 = vpack.c.b16 %v693, %v689
        %v802 = vpack.c.b16 %v694, %v690
        %v803 = vpack.c.b16 %v695, %v691
        %v804 = vpack.c.b16 %v700, %v696
        %v805 = vpack.c.b16 %v701, %v697
        %v806 = vpack.c.b16 %v702, %v698
        %v807 = vpack.c.b16 %v703, %v699
        %v808 = vpack.c.b16 %v708, %v704
        %v809 = vpack.c.b16 %v709, %v705
        %v810 = vpack.c.b16 %v710, %v706
        %v811 = vpack.c.b16 %v711, %v707
        %v812 = vpack.c.b16 %v716, %v712
        %v813 = vpack.c.b16 %v717, %v713
        %v814 = vpack.c.b16 %v718, %v714
        %v815 = vpack.c.b16 %v719, %v715
        %v816 = vpack.c.b16 %v724, %v720
        %v817 = vpack.c.b16 %v725, %v721
        %v818 = vpack.c.b16 %v726, %v722
        %v819 = vpack.c.b16 %v727, %v723
        %v820 = vpack.c.b16 %v732, %v728
        %v821 = vpack.c.b16 %v733, %v729
        %v822 = vpack.c.b16 %v734, %v730
        %v823 = vpack.c.b16 %v735, %v731
        %v824 = vpack.c.b16 %v740, %v736
        %v825 = vpack.c.b16 %v741, %v737
        %v826 = vpack.c.b16 %v742, %v738
        %v827 = vpack.c.b16 %v743, %v739
        %v828 = vpack.c.b16 %v748, %v744
        %v829 = vpack.c.b16 %v749, %v745
        %v830 = vpack.c.b16 %v750, %v746
        %v831 = vpack.c.b16 %v751, %v747
        %v832 = vpack.c.b16 %v756, %v752
        %v833 = vpack.c.b16 %v757, %v753
        %v834 = vpack.c.b16 %v758, %v754
        %v835 = vpack.c.b16 %v759, %v755
        %v836 = vpack.c.b16 %v764, %v760
        %v837 = vpack.c.b16 %v765, %v761
        %v838 = vpack.c.b16 %v766, %v762
        %v839 = vpack.c.b16 %v767, %v763
        %v840 = vpack.c.b16 %v772, %v768
        %v841 = vpack.c.b16 %v773, %v769
        %v842 = vpack.c.b16 %v774, %v770
        %v843 = vpack.c.b16 %v775, %v771
        %v844 = vpack.c.b16 %v780, %v776
        %v845 = vpack.c.b16 %v781, %v777
        %v846 = vpack.c.b16 %v782, %v778
        %v847 = vpack.c.b16 %v783, %v779
        %912 = vmatprep.subr.bf16.mxu0 %v785
        %913 = vmatpush1.bf16.msra.mxu0 %v784
        %914 = vmatprep.subr.bf16.mxu0 %v789
        %915 = vmatpush1.bf16.msra.mxu0 %v788
        %916 = vmatprep.subr.bf16.mxu0 %v793
        %917 = vmatpush1.bf16.msra.mxu0 %v792
        %918 = vmatprep.subr.bf16.mxu0 %v797
        %919 = vmatpush1.bf16.msra.mxu0 %v796
        %920 = vmatprep.subr.bf16.mxu0 %v801
        %921 = vmatpush1.bf16.msra.mxu0 %v800
        %922 = vmatprep.subr.bf16.mxu0 %v805
        %923 = vmatpush1.bf16.msra.mxu0 %v804
        %924 = vmatprep.subr.bf16.mxu0 %v809
        %925 = vmatpush1.bf16.msra.mxu0 %v808
        %926 = vmatprep.subr.bf16.mxu0 %v813
        %927 = vmatpush1.bf16.msra.mxu0 %v812
        %928 = vmatprep.subr.bf16.mxu0 %v817
        %929 = vmatpush1.bf16.msra.mxu0 %v816
        %930 = vmatprep.subr.bf16.mxu0 %v821
        %931 = vmatpush1.bf16.msra.mxu0 %v820
        %932 = vmatprep.subr.bf16.mxu0 %v825
        %933 = vmatpush1.bf16.msra.mxu0 %v824
        %934 = vmatprep.subr.bf16.mxu0 %v829
        %935 = vmatpush1.bf16.msra.mxu0 %v828
        %936 = vmatprep.subr.bf16.mxu0 %v833
        %937 = vmatpush1.bf16.msra.mxu0 %v832
        %938 = vmatprep.subr.bf16.mxu0 %v837
        %939 = vmatpush1.bf16.msra.mxu0 %v836
        %940 = vmatprep.subr.bf16.mxu0 %v841
        %941 = vmatpush1.bf16.msra.mxu0 %v840
        %942 = vmatprep.subr.bf16.mxu0 %v845
        %943 = vmatpush1.bf16.msra.mxu0 %v844
        %944 = vmatprep.mubr.bf16.mxu0 %v505
        %945 = vmatmul.mubr.bf16.gmra.mrb[0].mxu0 %v504
        %v946 = vpop.f32.mrb[0].mxu0
        %v947 = vadd.f32 %v575, %v946
        %v948 = vpop.f32.mrb[0].mxu0
        %v949 = vadd.f32 %v579, %v948
        %v950 = vpop.f32.mrb[0].mxu0
        %v951 = vpop.f32.mrb[0].mxu0
        %952 = vdwg.mxu0
        %953 = vmatprep.subr.bf16.mxu0 %v787
        %954 = vmatpush1.bf16.msra.mxu0 %v786
        %955 = vmatprep.subr.bf16.mxu0 %v791
        %956 = vmatpush1.bf16.msra.mxu0 %v790
        %957 = vmatprep.subr.bf16.mxu0 %v795
        %958 = vmatpush1.bf16.msra.mxu0 %v794
        %959 = vmatprep.subr.bf16.mxu0 %v799
        %960 = vmatpush1.bf16.msra.mxu0 %v798
        %961 = vmatprep.subr.bf16.mxu0 %v803
        %962 = vmatpush1.bf16.msra.mxu0 %v802
        %963 = vmatprep.subr.bf16.mxu0 %v807
        %964 = vmatpush1.bf16.msra.mxu0 %v806
        %965 = vmatprep.subr.bf16.mxu0 %v811
        %966 = vmatpush1.bf16.msra.mxu0 %v810
        %967 = vmatprep.subr.bf16.mxu0 %v815
        %968 = vmatpush1.bf16.msra.mxu0 %v814
        %969 = vmatprep.subr.bf16.mxu0 %v819
        %970 = vmatpush1.bf16.msra.mxu0 %v818
        %971 = vmatprep.subr.bf16.mxu0 %v823
        %972 = vmatpush1.bf16.msra.mxu0 %v822
        %973 = vmatprep.subr.bf16.mxu0 %v827
        %974 = vmatpush1.bf16.msra.mxu0 %v826
        %975 = vmatprep.subr.bf16.mxu0 %v831
        %976 = vmatpush1.bf16.msra.mxu0 %v830
        %977 = vmatprep.subr.bf16.mxu0 %v835
        %978 = vmatpush1.bf16.msra.mxu0 %v834
        %979 = vmatprep.subr.bf16.mxu0 %v839
        %980 = vmatpush1.bf16.msra.mxu0 %v838
        %981 = vmatprep.subr.bf16.mxu0 %v843
        %982 = vmatpush1.bf16.msra.mxu0 %v842
        %983 = vmatprep.subr.bf16.mxu0 %v847
        %984 = vmatpush1.bf16.msra.mxu0 %v846
        %985 = vmatprep.mubr.bf16.mxu0 %v505
        %986 = vmatmul.mubr.bf16.gmra.mrb[0].mxu0 %v504
        %v987 = vpop.f32.mrb[0].mxu0
        %v988 = vadd.f32 %v583, %v987
        %v989 = vpop.f32.mrb[0].mxu0
        %v990 = vadd.f32 %v587, %v989
        %v991 = vpop.f32.mrb[0].mxu0
        %v992 = vpop.f32.mrb[0].mxu0
        %993 = vdwg.mxu0
        %v994 = vld [vmem:[%s1] sm:$0xff]
        %v995 = vld [vmem:[%s1 + $0x8] sm:$0xff]
        %v996 = vld [vmem:[#allocation5] sm:$0xff]
        %v997 = vld [vmem:[#allocation5 + $0x8] sm:$0xff]
        %v998 = vmul.f32 %v947, %v994
        %v999 = vmul.f32 %v949, %v995
        %1000 = vrot.lane.b32.xlu0 %v947, 64
        %v1001 = vpop.permute.xlu0 %1000
        %1002 = vrot.lane.b32.xlu0 %v949, 64
        %v1003 = vpop.permute.xlu0 %1002
        %v1004 = vmul.f32 %v1001, %v996
        %v1005 = vmul.f32 %v1003, %v997
        %v1006 = vadd.f32 %v998, %v1004
        %v1007 = vadd.f32 %v999, %v1005
        %v1008 = vmul.f32 %v988, %v994
        %1009 = vrot.lane.b32.xlu0 %v988, 64
        %v1010 = vpop.permute.xlu0 %1009
        %v1011 = vmul.f32 %v1010, %v996
        %v1012 = vadd.f32 %v1008, %v1011
        %v1013 = vpack.c.bf16 %v1007, %v1006
        %v1014 = vpack.c.bf16 %v1012, %v1012
        %1015 = vmatprep.subr.bf16.mxu0 0
        %1016 = vmatpush1.bf16.xpose.msra.mxu0 %v1014
        %1017 = vmatprep.subr.bf16.mxu0 0
        %1018 = vmatpush1.bf16.xpose.msra.mxu0 0
        %1019 = vmatprep.subr.bf16.mxu0 0
        %1020 = vmatpush1.bf16.xpose.msra.mxu0 0
        %1021 = vmatprep.subr.bf16.mxu0 0
        %1022 = vmatpush1.bf16.xpose.msra.mxu0 0
        %1023 = vmatprep.subr.bf16.mxu0 0
        %1024 = vmatpush1.bf16.xpose.msra.mxu0 0
        %1025 = vmatprep.subr.bf16.mxu0 0
        %1026 = vmatpush1.bf16.xpose.msra.mxu0 0
        %1027 = vmatprep.subr.bf16.mxu0 0
        %1028 = vmatpush1.bf16.xpose.msra.mxu0 0
        %1029 = vmatprep.subr.bf16.mxu0 0
        %1030 = vmatpush1.bf16.xpose.msra.mxu0 0
        %1031 = vmatprep.subr.bf16.mxu0 0
        %1032 = vmatpush1.bf16.xpose.msra.mxu0 0
        %1033 = vmatprep.subr.bf16.mxu0 0
        %1034 = vmatpush1.bf16.xpose.msra.mxu0 0
        %1035 = vmatprep.subr.bf16.mxu0 0
        %1036 = vmatpush1.bf16.xpose.msra.mxu0 0
        %1037 = vmatprep.subr.bf16.mxu0 0
        %1038 = vmatpush1.bf16.xpose.msra.mxu0 0
        %1039 = vmatprep.subr.bf16.mxu0 0
        %1040 = vmatpush1.bf16.xpose.msra.mxu0 0
        %1041 = vmatprep.subr.bf16.mxu0 0
        %1042 = vmatpush1.bf16.xpose.msra.mxu0 0
        %1043 = vmatprep.subr.bf16.mxu0 0
        %1044 = vmatpush1.bf16.xpose.msra.mxu0 0
        %1045 = vmatprep.subr.bf16.mxu0 0
        %1046 = vmatpush1.bf16.xpose.msra.mxu0 0
        %1047 = vmatprep.mubr.bf16.mxu0 0
        %1048 = vmatmul.mubr.bf16.gmra.mrb[0].mxu0 %v1013
        %v1049 = vpop.f32.mrb[0].mxu0
        %v1050 = vadd.f32 0.0, %v1049
        %v1051 = vpop.f32.mrb[0].mxu0
        %v1052 = vpop.f32.mrb[0].mxu0
        %v1053 = vadd.f32 0.0, %v1052
        %v1054 = vpop.f32.mrb[0].mxu0
        %1055 = vdwg.mxu0
        %v1056 = vmul.f32 %v1050, 0.088388346
        %v1057 = vmul.f32 %v1053, 0.088388346
        %v1058 = vld [vmem:[%s3] sm:$0xff]
        %v1059 = vld [vmem:[%s3 + $0x8] sm:$0xff]
        %v1060 = vadd.f32 %v1056, %v1058
        %v1061 = vadd.f32 %v1057, %v1059
        %vm1062 = vcmask 64512
        %v1063 = vsel %vm1062, %v1060, -inf
        %1064 = vmax.xlane.f32.xlu0 %v1063
        %v1065 = vpop.xlane.xlu0 %1064
        %v1066 = vsel %vm1062, %v1061, -inf
        %1067 = vmax.xlane.f32.xlu0 %v1066
        %v1068 = vpop.xlane.xlu0 %1067
        %v1069 = vsub.f32 %v1060, %v1065
        %v1070 = vsub.f32 %v1061, %v1068
        %v1071 = vmul.f32 %v1069, 1.442695
        %v1072 = vpow.pop %v1071
        %v1073 = vmul.f32 %v1070, 1.442695
        %v1074 = vpow.pop %v1073
        %v1075 = vsel %vm1062, %v1072, 0.0
        %1076 = vadd.xlane.f32.xlu0 %v1075
        %v1077 = vpop.xlane.xlu0 %1076
        %v1078 = vsel %vm1062, %v1074, 0.0
        %1079 = vadd.xlane.f32.xlu0 %v1078
        %v1080 = vpop.xlane.xlu0 %1079
        %v1081 = vrcp.pop %v1077
        %v1082 = vrcp.pop %v1080
        %v1083 = vmul.f32 %v1072, %v1081
        %v1084 = vmul.f32 %v1074, %v1082
        %v1085 = vpack.c.bf16 %v1084, %v1083
        %v1086 = vpack.c.bf16 %v990, %v990
        %v1088 = vsel %vm1062, %v1085, 0
        %vm1090 = vcmask 1043456
        %v1092 = vsel %vm1090, %v1086, 0
        %1094 = vmatprep.subr.bf16.mxu0 0
        %1095 = vmatpush1.bf16.msra.mxu0 %v1092
        %1096 = vmatprep.subr.bf16.mxu0 0
        %1097 = vmatpush1.bf16.msra.mxu0 0
        %1098 = vmatprep.subr.bf16.mxu0 0
        %1099 = vmatpush1.bf16.msra.mxu0 0
        %1100 = vmatprep.subr.bf16.mxu0 0
        %1101 = vmatpush1.bf16.msra.mxu0 0
        %1102 = vmatprep.subr.bf16.mxu0 0
        %1103 = vmatpush1.bf16.msra.mxu0 0
        %1104 = vmatprep.subr.bf16.mxu0 0
        %1105 = vmatpush1.bf16.msra.mxu0 0
        %1106 = vmatprep.subr.bf16.mxu0 0
        %1107 = vmatpush1.bf16.msra.mxu0 0
        %1108 = vmatprep.subr.bf16.mxu0 0
        %1109 = vmatpush1.bf16.msra.mxu0 0
        %1110 = vmatprep.subr.bf16.mxu0 0
        %1111 = vmatpush1.bf16.msra.mxu0 0
        %1112 = vmatprep.subr.bf16.mxu0 0
        %1113 = vmatpush1.bf16.msra.mxu0 0
        %1114 = vmatprep.subr.bf16.mxu0 0
        %1115 = vmatpush1.bf16.msra.mxu0 0
        %1116 = vmatprep.subr.bf16.mxu0 0
        %1117 = vmatpush1.bf16.msra.mxu0 0
        %1118 = vmatprep.subr.bf16.mxu0 0
        %1119 = vmatpush1.bf16.msra.mxu0 0
        %1120 = vmatprep.subr.bf16.mxu0 0
        %1121 = vmatpush1.bf16.msra.mxu0 0
        %1122 = vmatprep.subr.bf16.mxu0 0
        %1123 = vmatpush1.bf16.msra.mxu0 0
        %1124 = vmatprep.subr.bf16.mxu0 0
        %1125 = vmatpush1.bf16.msra.mxu0 0
        %1126 = vmatprep.mubr.bf16.mxu0 0
        %1127 = vmatmul.mubr.bf16.gmra.mrb[0].mxu0 %v1088
        %v1128 = vpop.f32.mrb[0].mxu0
        %v1129 = vadd.f32 0.0, %v1128
        %v1130 = vpop.f32.mrb[0].mxu0
        %v1131 = vpop.f32.mrb[0].mxu0
        %v1132 = vadd.f32 0.0, %v1131
        %v1133 = vpop.f32.mrb[0].mxu0
        %1134 = vdwg.mxu0
        %v1135 = vld [vmem:[#allocation8] sm:$0xff]
        %v1136 = vld [vmem:[#allocation8 + $0x8] sm:$0xff]
        %v1137 = vld [vmem:[#allocation8 + $0x10] sm:$0xff]
        %v1138 = vld [vmem:[#allocation8 + $0x18] sm:$0xff]
        %v1139 = vld [vmem:[#allocation8 + $0x20] sm:$0xff]
        %v1140 = vld [vmem:[#allocation8 + $0x28] sm:$0xff]
        %v1141 = vld [vmem:[#allocation8 + $0x30] sm:$0xff]
        %v1142 = vld [vmem:[#allocation8 + $0x38] sm:$0xff]
        %v1143 = vld [vmem:[#allocation8 + $0x40] sm:$0xff]
        %v1144 = vld [vmem:[#allocation8 + $0x48] sm:$0xff]
        %v1145 = vld [vmem:[#allocation8 + $0x50] sm:$0xff]
        %v1146 = vld [vmem:[#allocation8 + $0x58] sm:$0xff]
        %v1147 = vld [vmem:[#allocation8 + $0x60] sm:$0xff]
        %v1148 = vld [vmem:[#allocation8 + $0x68] sm:$0xff]
        %v1149 = vld [vmem:[#allocation8 + $0x70] sm:$0xff]
        %v1150 = vld [vmem:[#allocation8 + $0x78] sm:$0xff]
        %v1151 = vld [vmem:[#allocation8 + $0x80] sm:$0xff]
        %v1152 = vld [vmem:[#allocation8 + $0x88] sm:$0xff]
        %v1153 = vld [vmem:[#allocation8 + $0x90] sm:$0xff]
        %v1154 = vld [vmem:[#allocation8 + $0x98] sm:$0xff]
        %v1155 = vld [vmem:[#allocation8 + $0xa0] sm:$0xff]
        %v1156 = vld [vmem:[#allocation8 + $0xa8] sm:$0xff]
        %v1157 = vld [vmem:[#allocation8 + $0xb0] sm:$0xff]
        %v1158 = vld [vmem:[#allocation8 + $0xb8] sm:$0xff]
        %v1159 = vld [vmem:[#allocation8 + $0xc0] sm:$0xff]
        %v1160 = vld [vmem:[#allocation8 + $0xc8] sm:$0xff]
        %v1161 = vld [vmem:[#allocation8 + $0xd0] sm:$0xff]
        %v1162 = vld [vmem:[#allocation8 + $0xd8] sm:$0xff]
        %v1163 = vld [vmem:[#allocation8 + $0xe0] sm:$0xff]
        %v1164 = vld [vmem:[#allocation8 + $0xe8] sm:$0xff]
        %v1165 = vld [vmem:[#allocation8 + $0xf0] sm:$0xff]
        %v1166 = vld [vmem:[#allocation8 + $0xf8] sm:$0xff]
        %v1167 = vpack.c.bf16 %v1129, %v1129
        %v1168 = vpack.c.bf16 %v1132, %v1132
        %v1185 = vunpack.c.l.b16 %v1151
        %v1186 = vunpack.c.h.b16 %v1151
        %v1187 = vunpack.c.l.b16 %v1152
        %v1188 = vunpack.c.h.b16 %v1152
        %v1189 = vunpack.c.l.b16 %v1153
        %v1190 = vunpack.c.h.b16 %v1153
        %v1191 = vunpack.c.l.b16 %v1154
        %v1192 = vunpack.c.h.b16 %v1154
        %v1193 = vunpack.c.l.b16 %v1155
        %v1194 = vunpack.c.h.b16 %v1155
        %v1195 = vunpack.c.l.b16 %v1156
        %v1196 = vunpack.c.h.b16 %v1156
        %v1197 = vunpack.c.l.b16 %v1157
        %v1198 = vunpack.c.h.b16 %v1157
        %v1199 = vunpack.c.l.b16 %v1158
        %v1200 = vunpack.c.h.b16 %v1158
        %v1201 = vunpack.c.l.b16 %v1159
        %v1202 = vunpack.c.h.b16 %v1159
        %v1203 = vunpack.c.l.b16 %v1160
        %v1204 = vunpack.c.h.b16 %v1160
        %v1205 = vunpack.c.l.b16 %v1161
        %v1206 = vunpack.c.h.b16 %v1161
        %v1207 = vunpack.c.l.b16 %v1162
        %v1208 = vunpack.c.h.b16 %v1162
        %v1209 = vunpack.c.l.b16 %v1163
        %v1210 = vunpack.c.h.b16 %v1163
        %v1211 = vunpack.c.l.b16 %v1164
        %v1212 = vunpack.c.h.b16 %v1164
        %v1213 = vunpack.c.l.b16 %v1165
        %v1214 = vunpack.c.h.b16 %v1165
        %v1215 = vunpack.c.l.b16 %v1166
        %v1216 = vunpack.c.h.b16 %v1166
        %v1217 = vpack.c.b16 %v1187, %v1185
        %v1218 = vpack.c.b16 %v1188, %v1186
        %v1219 = vpack.c.b16 %v1191, %v1189
        %v1220 = vpack.c.b16 %v1192, %v1190
        %v1221 = vpack.c.b16 %v1195, %v1193
        %v1222 = vpack.c.b16 %v1196, %v1194
        %v1223 = vpack.c.b16 %v1199, %v1197
        %v1224 = vpack.c.b16 %v1200, %v1198
        %v1225 = vpack.c.b16 %v1203, %v1201
        %v1226 = vpack.c.b16 %v1204, %v1202
        %v1227 = vpack.c.b16 %v1207, %v1205
        %v1228 = vpack.c.b16 %v1208, %v1206
        %v1229 = vpack.c.b16 %v1211, %v1209
        %v1230 = vpack.c.b16 %v1212, %v1210
        %v1231 = vpack.c.b16 %v1215, %v1213
        %v1232 = vpack.c.b16 %v1216, %v1214
        %1249 = vmatprep.subr.bf16.mxu0 %v1218
        %1250 = vmatpush1.bf16.msra.mxu0 %v1217
        %1251 = vmatprep.subr.bf16.mxu0 %v1220
        %1252 = vmatpush1.bf16.msra.mxu0 %v1219
        %1253 = vmatprep.subr.bf16.mxu0 %v1222
        %1254 = vmatpush1.bf16.msra.mxu0 %v1221
        %1255 = vmatprep.subr.bf16.mxu0 %v1224
        %1256 = vmatpush1.bf16.msra.mxu0 %v1223
        %1257 = vmatprep.subr.bf16.mxu0 %v1226
        %1258 = vmatpush1.bf16.msra.mxu0 %v1225
        %1259 = vmatprep.subr.bf16.mxu0 %v1228
        %1260 = vmatpush1.bf16.msra.mxu0 %v1227
        %1261 = vmatprep.subr.bf16.mxu0 %v1230
        %1262 = vmatpush1.bf16.msra.mxu0 %v1229
        %1263 = vmatprep.subr.bf16.mxu0 %v1232
        %1264 = vmatpush1.bf16.msra.mxu0 %v1231
        %1265 = vmatprep.subr.bf16.mxu0 0
        %1266 = vmatpush1.bf16.msra.mxu0 0
        %1267 = vmatprep.subr.bf16.mxu0 0
        %1268 = vmatpush1.bf16.msra.mxu0 0
        %1269 = vmatprep.subr.bf16.mxu0 0
        %1270 = vmatpush1.bf16.msra.mxu0 0
        %1271 = vmatprep.subr.bf16.mxu0 0
        %1272 = vmatpush1.bf16.msra.mxu0 0
        %1273 = vmatprep.subr.bf16.mxu0 0
        %1274 = vmatpush1.bf16.msra.mxu0 0
        %1275 = vmatprep.subr.bf16.mxu0 0
        %1276 = vmatpush1.bf16.msra.mxu0 0
        %1277 = vmatprep.subr.bf16.mxu0 0
        %1278 = vmatpush1.bf16.msra.mxu0 0
        %1279 = vmatprep.subr.bf16.mxu0 0
        %1280 = vmatpush1.bf16.msra.mxu0 0
        %1281 = vmatprep.mubr.bf16.mxu0 0
        %1282 = vmatmul.mubr.bf16.gmra.mrb[0].mxu0 %v1168
        %v1283 = vpop.f32.mrb[0].mxu0
        %v1284 = vadd.f32 0.0, %v1283
        %v1285 = vpop.f32.mrb[0].mxu0
        %v1286 = vadd.f32 0.0, %v1285
        %v1287 = vpop.f32.mrb[0].mxu0
        %v1288 = vpop.f32.mrb[0].mxu0
        %1289 = vdwg.mxu0
        %v1306 = vunpack.c.l.b16 %v1135
        %v1307 = vunpack.c.h.b16 %v1135
        %v1308 = vunpack.c.l.b16 %v1136
        %v1309 = vunpack.c.h.b16 %v1136
        %v1310 = vunpack.c.l.b16 %v1137
        %v1311 = vunpack.c.h.b16 %v1137
        %v1312 = vunpack.c.l.b16 %v1138
        %v1313 = vunpack.c.h.b16 %v1138
        %v1314 = vunpack.c.l.b16 %v1139
        %v1315 = vunpack.c.h.b16 %v1139
        %v1316 = vunpack.c.l.b16 %v1140
        %v1317 = vunpack.c.h.b16 %v1140
        %v1318 = vunpack.c.l.b16 %v1141
        %v1319 = vunpack.c.h.b16 %v1141
        %v1320 = vunpack.c.l.b16 %v1142
        %v1321 = vunpack.c.h.b16 %v1142
        %v1322 = vunpack.c.l.b16 %v1143
        %v1323 = vunpack.c.h.b16 %v1143
        %v1324 = vunpack.c.l.b16 %v1144
        %v1325 = vunpack.c.h.b16 %v1144
        %v1326 = vunpack.c.l.b16 %v1145
        %v1327 = vunpack.c.h.b16 %v1145
        %v1328 = vunpack.c.l.b16 %v1146
        %v1329 = vunpack.c.h.b16 %v1146
        %v1330 = vunpack.c.l.b16 %v1147
        %v1331 = vunpack.c.h.b16 %v1147
        %v1332 = vunpack.c.l.b16 %v1148
        %v1333 = vunpack.c.h.b16 %v1148
        %v1334 = vunpack.c.l.b16 %v1149
        %v1335 = vunpack.c.h.b16 %v1149
        %v1336 = vunpack.c.l.b16 %v1150
        %v1337 = vunpack.c.h.b16 %v1150
        %v1338 = vpack.c.b16 %v1308, %v1306
        %v1339 = vpack.c.b16 %v1309, %v1307
        %v1340 = vpack.c.b16 %v1312, %v1310
        %v1341 = vpack.c.b16 %v1313, %v1311
        %v1342 = vpack.c.b16 %v1316, %v1314
        %v1343 = vpack.c.b16 %v1317, %v1315
        %v1344 = vpack.c.b16 %v1320, %v1318
        %v1345 = vpack.c.b16 %v1321, %v1319
        %v1346 = vpack.c.b16 %v1324, %v1322
        %v1347 = vpack.c.b16 %v1325, %v1323
        %v1348 = vpack.c.b16 %v1328, %v1326
        %v1349 = vpack.c.b16 %v1329, %v1327
        %v1350 = vpack.c.b16 %v1332, %v1330
        %v1351 = vpack.c.b16 %v1333, %v1331
        %v1352 = vpack.c.b16 %v1336, %v1334
        %v1353 = vpack.c.b16 %v1337, %v1335
        %1370 = vmatprep.subr.bf16.mxu0 %v1339
        %1371 = vmatpush1.bf16.msra.mxu0 %v1338
        %1372 = vmatprep.subr.bf16.mxu0 %v1341
        %1373 = vmatpush1.bf16.msra.mxu0 %v1340
        %1374 = vmatprep.subr.bf16.mxu0 %v1343
        %1375 = vmatpush1.bf16.msra.mxu0 %v1342
        %1376 = vmatprep.subr.bf16.mxu0 %v1345
        %1377 = vmatpush1.bf16.msra.mxu0 %v1344
        %1378 = vmatprep.subr.bf16.mxu0 %v1347
        %1379 = vmatpush1.bf16.msra.mxu0 %v1346
        %1380 = vmatprep.subr.bf16.mxu0 %v1349
        %1381 = vmatpush1.bf16.msra.mxu0 %v1348
        %1382 = vmatprep.subr.bf16.mxu0 %v1351
        %1383 = vmatpush1.bf16.msra.mxu0 %v1350
        %1384 = vmatprep.subr.bf16.mxu0 %v1353
        %1385 = vmatpush1.bf16.msra.mxu0 %v1352
        %1386 = vmatprep.subr.bf16.mxu0 0
        %1387 = vmatpush1.bf16.msra.mxu0 0
        %1388 = vmatprep.subr.bf16.mxu0 0
        %1389 = vmatpush1.bf16.msra.mxu0 0
        %1390 = vmatprep.subr.bf16.mxu0 0
        %1391 = vmatpush1.bf16.msra.mxu0 0
        %1392 = vmatprep.subr.bf16.mxu0 0
        %1393 = vmatpush1.bf16.msra.mxu0 0
        %1394 = vmatprep.subr.bf16.mxu0 0
        %1395 = vmatpush1.bf16.msra.mxu0 0
        %1396 = vmatprep.subr.bf16.mxu0 0
        %1397 = vmatpush1.bf16.msra.mxu0 0
        %1398 = vmatprep.subr.bf16.mxu0 0
        %1399 = vmatpush1.bf16.msra.mxu0 0
        %1400 = vmatprep.subr.bf16.mxu0 0
        %1401 = vmatpush1.bf16.msra.mxu0 0
        %1402 = vmatprep.mubr.bf16.mxu0 0
        %1403 = vmatmul.mubr.bf16.gmra.mrb[0].mxu0 %v1167
        %v1404 = vpop.f32.mrb[0].mxu0
        %v1405 = vadd.f32 %v1284, %v1404
        %v1406 = vpop.f32.mrb[0].mxu0
        %v1407 = vadd.f32 %v1286, %v1406
        %v1408 = vpop.f32.mrb[0].mxu0
        %v1409 = vpop.f32.mrb[0].mxu0
        %1410 = vdwg.mxu0
        %v1411 = vadd.f32 %v477, %v1405
        %v1412 = vadd.f32 %v478, %v1407
        %v1413 = vld [vmem:[%s8] sm:$0x3]
        %v1414 = vmul.f32 %v1411, %v1411
        %v1415 = vmul.f32 %v1412, %v1412
        %v1416 = vadd.f32 %v1414, %v1415
        %1417 = vadd.xlane.f32.xlu0 %v1416
        %v1418 = vpop.xlane.xlu0 %1417
        %v1419 = vmul.f32 %v1418, %v485
        %v1420 = vadd.f32 %v1419, 1e-06
        %v1421 = vrsqrt.pop %v1420
        %v1422 = vmul.f32 %v1411, %v1421
        %v1423 = vmul.f32 %v1412, %v1421
        %v1425 = vlaneseq
        %v1426 = vshrl.u32 %v1425, 7
        %v1427 = vsub.s32 0, %v1426
        %v1428 = vrot.slane %v1413, %v1427
        %v1429 = vlaneseq
        %v1430 = vshrl.u32 %v1429, 7
        %v1431 = vsub.s32 1, %v1430
        %v1432 = vrot.slane %v1413, %v1431
        %v1435 = vmul.f32 %v1422, %v1428
        %v1436 = vmul.f32 %v1423, %v1432
        %v1437 = vpack.c.bf16 %v1435, %v1435
        %v1438 = vpack.c.bf16 %v1436, %v1436
        %v1439 = vld [vmem:[#allocation10] sm:$0xff]
        %v1440 = vld [vmem:[#allocation10 + $0x8] sm:$0xff]
        %v1441 = vld [vmem:[#allocation10 + $0x10] sm:$0xff]
        %v1442 = vld [vmem:[#allocation10 + $0x18] sm:$0xff]
        %v1443 = vld [vmem:[#allocation10 + $0x20] sm:$0xff]
        %v1444 = vld [vmem:[#allocation10 + $0x28] sm:$0xff]
        %v1445 = vld [vmem:[#allocation10 + $0x30] sm:$0xff]
        %v1446 = vld [vmem:[#allocation10 + $0x38] sm:$0xff]
        %v1447 = vld [vmem:[#allocation10 + $0x40] sm:$0xff]
        %v1448 = vld [vmem:[#allocation10 + $0x48] sm:$0xff]
        %v1449 = vld [vmem:[#allocation10 + $0x50] sm:$0xff]
        %v1450 = vld [vmem:[#allocation10 + $0x58] sm:$0xff]
        %v1451 = vld [vmem:[#allocation10 + $0x60] sm:$0xff]
        %v1452 = vld [vmem:[#allocation10 + $0x68] sm:$0xff]
        %v1453 = vld [vmem:[#allocation10 + $0x70] sm:$0xff]
        %v1454 = vld [vmem:[#allocation10 + $0x78] sm:$0xff]
        %v1455 = vld [vmem:[#allocation10 + $0x80] sm:$0xff]
        %v1456 = vld [vmem:[#allocation10 + $0x88] sm:$0xff]
        %v1457 = vld [vmem:[#allocation10 + $0x90] sm:$0xff]
        %v1458 = vld [vmem:[#allocation10 + $0x98] sm:$0xff]
        %v1459 = vld [vmem:[#allocation10 + $0xa0] sm:$0xff]
        %v1460 = vld [vmem:[#allocation10 + $0xa8] sm:$0xff]
        %v1461 = vld [vmem:[#allocation10 + $0xb0] sm:$0xff]
        %v1462 = vld [vmem:[#allocation10 + $0xb8] sm:$0xff]
        %v1463 = vld [vmem:[#allocation10 + $0xc0] sm:$0xff]
        %v1464 = vld [vmem:[#allocation10 + $0xc8] sm:$0xff]
        %v1465 = vld [vmem:[#allocation10 + $0xd0] sm:$0xff]
        %v1466 = vld [vmem:[#allocation10 + $0xd8] sm:$0xff]
        %v1467 = vld [vmem:[#allocation10 + $0xe0] sm:$0xff]
        %v1468 = vld [vmem:[#allocation10 + $0xe8] sm:$0xff]
        %v1469 = vld [vmem:[#allocation10 + $0xf0] sm:$0xff]
        %v1470 = vld [vmem:[#allocation10 + $0xf8] sm:$0xff]
        %v1471 = vld [vmem:[#allocation10 + $0x100] sm:$0xff]
        %v1472 = vld [vmem:[#allocation10 + $0x108] sm:$0xff]
        %v1473 = vld [vmem:[#allocation10 + $0x110] sm:$0xff]
        %v1474 = vld [vmem:[#allocation10 + $0x118] sm:$0xff]
        %v1475 = vld [vmem:[#allocation10 + $0x120] sm:$0xff]
        %v1476 = vld [vmem:[#allocation10 + $0x128] sm:$0xff]
        %v1477 = vld [vmem:[#allocation10 + $0x130] sm:$0xff]
        %v1478 = vld [vmem:[#allocation10 + $0x138] sm:$0xff]
        %v1479 = vld [vmem:[#allocation10 + $0x140] sm:$0xff]
        %v1480 = vld [vmem:[#allocation10 + $0x148] sm:$0xff]
        %v1481 = vld [vmem:[#allocation10 + $0x150] sm:$0xff]
        %v1482 = vld [vmem:[#allocation10 + $0x158] sm:$0xff]
        %v1483 = vld [vmem:[#allocation10 + $0x160] sm:$0xff]
        %v1484 = vld [vmem:[#allocation10 + $0x168] sm:$0xff]
        %v1485 = vld [vmem:[#allocation10 + $0x170] sm:$0xff]
        %v1486 = vld [vmem:[#allocation10 + $0x178] sm:$0xff]
        %v1487 = vld [vmem:[#allocation10 + $0x180] sm:$0xff]
        %v1488 = vld [vmem:[#allocation10 + $0x188] sm:$0xff]
        %v1489 = vld [vmem:[#allocation10 + $0x190] sm:$0xff]
        %v1490 = vld [vmem:[#allocation10 + $0x198] sm:$0xff]
        %v1491 = vld [vmem:[#allocation10 + $0x1a0] sm:$0xff]
        %v1492 = vld [vmem:[#allocation10 + $0x1a8] sm:$0xff]
        %v1493 = vld [vmem:[#allocation10 + $0x1b0] sm:$0xff]
        %v1494 = vld [vmem:[#allocation10 + $0x1b8] sm:$0xff]
        %v1495 = vld [vmem:[#allocation10 + $0x1c0] sm:$0xff]
        %v1496 = vld [vmem:[#allocation10 + $0x1c8] sm:$0xff]
        %v1497 = vld [vmem:[#allocation10 + $0x1d0] sm:$0xff]
        %v1498 = vld [vmem:[#allocation10 + $0x1d8] sm:$0xff]
        %v1499 = vld [vmem:[#allocation10 + $0x1e0] sm:$0xff]
        %v1500 = vld [vmem:[#allocation10 + $0x1e8] sm:$0xff]
        %v1501 = vld [vmem:[#allocation10 + $0x1f0] sm:$0xff]
        %v1502 = vld [vmem:[#allocation10 + $0x1f8] sm:$0xff]
        %v1503 = vld [vmem:[#allocation10 + $0x200] sm:$0xff]
        %v1504 = vld [vmem:[#allocation10 + $0x208] sm:$0xff]
        %v1505 = vld [vmem:[#allocation10 + $0x210] sm:$0xff]
        %v1506 = vld [vmem:[#allocation10 + $0x218] sm:$0xff]
        %v1507 = vld [vmem:[#allocation10 + $0x220] sm:$0xff]
        %v1508 = vld [vmem:[#allocation10 + $0x228] sm:$0xff]
        %v1509 = vld [vmem:[#allocation10 + $0x230] sm:$0xff]
        %v1510 = vld [vmem:[#allocation10 + $0x238] sm:$0xff]
        %v1511 = vld [vmem:[#allocation10 + $0x240] sm:$0xff]
        %v1512 = vld [vmem:[#allocation10 + $0x248] sm:$0xff]
        %v1513 = vld [vmem:[#allocation10 + $0x250] sm:$0xff]
        %v1514 = vld [vmem:[#allocation10 + $0x258] sm:$0xff]
        %v1515 = vld [vmem:[#allocation10 + $0x260] sm:$0xff]
        %v1516 = vld [vmem:[#allocation10 + $0x268] sm:$0xff]
        %v1517 = vld [vmem:[#allocation10 + $0x270] sm:$0xff]
        %v1518 = vld [vmem:[#allocation10 + $0x278] sm:$0xff]
        %v1519 = vld [vmem:[#allocation10 + $0x280] sm:$0xff]
        %v1520 = vld [vmem:[#allocation10 + $0x288] sm:$0xff]
        %v1521 = vld [vmem:[#allocation10 + $0x290] sm:$0xff]
        %v1522 = vld [vmem:[#allocation10 + $0x298] sm:$0xff]
        %v1523 = vld [vmem:[#allocation10 + $0x2a0] sm:$0xff]
        %v1524 = vld [vmem:[#allocation10 + $0x2a8] sm:$0xff]
        %v1525 = vld [vmem:[#allocation10 + $0x2b0] sm:$0xff]
        %v1526 = vld [vmem:[#allocation10 + $0x2b8] sm:$0xff]
        %v1527 = vld [vmem:[#allocation10 + $0x2c0] sm:$0xff]
        %v1528 = vld [vmem:[#allocation10 + $0x2c8] sm:$0xff]
        %v1529 = vld [vmem:[#allocation10 + $0x2d0] sm:$0xff]
        %v1530 = vld [vmem:[#allocation10 + $0x2d8] sm:$0xff]
        %v1531 = vld [vmem:[#allocation10 + $0x2e0] sm:$0xff]
        %v1532 = vld [vmem:[#allocation10 + $0x2e8] sm:$0xff]
        %v1533 = vld [vmem:[#allocation10 + $0x2f0] sm:$0xff]
        %v1534 = vld [vmem:[#allocation10 + $0x2f8] sm:$0xff]
        %v1535 = vld [vmem:[#allocation10 + $0x300] sm:$0xff]
        %v1536 = vld [vmem:[#allocation10 + $0x308] sm:$0xff]
        %v1537 = vld [vmem:[#allocation10 + $0x310] sm:$0xff]
        %v1538 = vld [vmem:[#allocation10 + $0x318] sm:$0xff]
        %v1539 = vld [vmem:[#allocation10 + $0x320] sm:$0xff]
        %v1540 = vld [vmem:[#allocation10 + $0x328] sm:$0xff]
        %v1541 = vld [vmem:[#allocation10 + $0x330] sm:$0xff]
        %v1542 = vld [vmem:[#allocation10 + $0x338] sm:$0xff]
        %v1543 = vld [vmem:[#allocation10 + $0x340] sm:$0xff]
        %v1544 = vld [vmem:[#allocation10 + $0x348] sm:$0xff]
        %v1545 = vld [vmem:[#allocation10 + $0x350] sm:$0xff]
        %v1546 = vld [vmem:[#allocation10 + $0x358] sm:$0xff]
        %v1547 = vld [vmem:[#allocation10 + $0x360] sm:$0xff]
        %v1548 = vld [vmem:[#allocation10 + $0x368] sm:$0xff]
        %v1549 = vld [vmem:[#allocation10 + $0x370] sm:$0xff]
        %v1550 = vld [vmem:[#allocation10 + $0x378] sm:$0xff]
        %v1551 = vld [vmem:[#allocation10 + $0x380] sm:$0xff]
        %v1552 = vld [vmem:[#allocation10 + $0x388] sm:$0xff]
        %v1553 = vld [vmem:[#allocation10 + $0x390] sm:$0xff]
        %v1554 = vld [vmem:[#allocation10 + $0x398] sm:$0xff]
        %v1555 = vld [vmem:[#allocation10 + $0x3a0] sm:$0xff]
        %v1556 = vld [vmem:[#allocation10 + $0x3a8] sm:$0xff]
        %v1557 = vld [vmem:[#allocation10 + $0x3b0] sm:$0xff]
        %v1558 = vld [vmem:[#allocation10 + $0x3b8] sm:$0xff]
        %v1559 = vld [vmem:[#allocation10 + $0x3c0] sm:$0xff]
        %v1560 = vld [vmem:[#allocation10 + $0x3c8] sm:$0xff]
        %v1561 = vld [vmem:[#allocation10 + $0x3d0] sm:$0xff]
        %v1562 = vld [vmem:[#allocation10 + $0x3d8] sm:$0xff]
        %v1563 = vld [vmem:[#allocation10 + $0x3e0] sm:$0xff]
        %v1564 = vld [vmem:[#allocation10 + $0x3e8] sm:$0xff]
        %v1565 = vld [vmem:[#allocation10 + $0x3f0] sm:$0xff]
        %v1566 = vld [vmem:[#allocation10 + $0x3f8] sm:$0xff]
        %v1695 = vunpack.c.l.b16 %v1439
        %v1696 = vunpack.c.h.b16 %v1439
        %v1697 = vunpack.c.l.b16 %v1440
        %v1698 = vunpack.c.h.b16 %v1440
        %v1699 = vunpack.c.l.b16 %v1441
        %v1700 = vunpack.c.h.b16 %v1441
        %v1701 = vunpack.c.l.b16 %v1442
        %v1702 = vunpack.c.h.b16 %v1442
        %v1703 = vunpack.c.l.b16 %v1443
        %v1704 = vunpack.c.h.b16 %v1443
        %v1705 = vunpack.c.l.b16 %v1444
        %v1706 = vunpack.c.h.b16 %v1444
        %v1707 = vunpack.c.l.b16 %v1445
        %v1708 = vunpack.c.h.b16 %v1445
        %v1709 = vunpack.c.l.b16 %v1446
        %v1710 = vunpack.c.h.b16 %v1446
        %v1711 = vunpack.c.l.b16 %v1447
        %v1712 = vunpack.c.h.b16 %v1447
        %v1713 = vunpack.c.l.b16 %v1448
        %v1714 = vunpack.c.h.b16 %v1448
        %v1715 = vunpack.c.l.b16 %v1449
        %v1716 = vunpack.c.h.b16 %v1449
        %v1717 = vunpack.c.l.b16 %v1450
        %v1718 = vunpack.c.h.b16 %v1450
        %v1719 = vunpack.c.l.b16 %v1451
        %v1720 = vunpack.c.h.b16 %v1451
        %v1721 = vunpack.c.l.b16 %v1452
        %v1722 = vunpack.c.h.b16 %v1452
        %v1723 = vunpack.c.l.b16 %v1453
        %v1724 = vunpack.c.h.b16 %v1453
        %v1725 = vunpack.c.l.b16 %v1454
        %v1726 = vunpack.c.h.b16 %v1454
        %v1727 = vunpack.c.l.b16 %v1455
        %v1728 = vunpack.c.h.b16 %v1455
        %v1729 = vunpack.c.l.b16 %v1456
        %v1730 = vunpack.c.h.b16 %v1456
        %v1731 = vunpack.c.l.b16 %v1457
        %v1732 = vunpack.c.h.b16 %v1457
        %v1733 = vunpack.c.l.b16 %v1458
        %v1734 = vunpack.c.h.b16 %v1458
        %v1735 = vunpack.c.l.b16 %v1459
        %v1736 = vunpack.c.h.b16 %v1459
        %v1737 = vunpack.c.l.b16 %v1460
        %v1738 = vunpack.c.h.b16 %v1460
        %v1739 = vunpack.c.l.b16 %v1461
        %v1740 = vunpack.c.h.b16 %v1461
        %v1741 = vunpack.c.l.b16 %v1462
        %v1742 = vunpack.c.h.b16 %v1462
        %v1743 = vunpack.c.l.b16 %v1463
        %v1744 = vunpack.c.h.b16 %v1463
        %v1745 = vunpack.c.l.b16 %v1464
        %v1746 = vunpack.c.h.b16 %v1464
        %v1747 = vunpack.c.l.b16 %v1465
        %v1748 = vunpack.c.h.b16 %v1465
        %v1749 = vunpack.c.l.b16 %v1466
        %v1750 = vunpack.c.h.b16 %v1466
        %v1751 = vunpack.c.l.b16 %v1467
        %v1752 = vunpack.c.h.b16 %v1467
        %v1753 = vunpack.c.l.b16 %v1468
        %v1754 = vunpack.c.h.b16 %v1468
        %v1755 = vunpack.c.l.b16 %v1469
        %v1756 = vunpack.c.h.b16 %v1469
        %v1757 = vunpack.c.l.b16 %v1470
        %v1758 = vunpack.c.h.b16 %v1470
        %v1759 = vunpack.c.l.b16 %v1471
        %v1760 = vunpack.c.h.b16 %v1471
        %v1761 = vunpack.c.l.b16 %v1472
        %v1762 = vunpack.c.h.b16 %v1472
        %v1763 = vunpack.c.l.b16 %v1473
        %v1764 = vunpack.c.h.b16 %v1473
        %v1765 = vunpack.c.l.b16 %v1474
        %v1766 = vunpack.c.h.b16 %v1474
        %v1767 = vunpack.c.l.b16 %v1475
        %v1768 = vunpack.c.h.b16 %v1475
        %v1769 = vunpack.c.l.b16 %v1476
        %v1770 = vunpack.c.h.b16 %v1476
        %v1771 = vunpack.c.l.b16 %v1477
        %v1772 = vunpack.c.h.b16 %v1477
        %v1773 = vunpack.c.l.b16 %v1478
        %v1774 = vunpack.c.h.b16 %v1478
        %v1775 = vunpack.c.l.b16 %v1479
        %v1776 = vunpack.c.h.b16 %v1479
        %v1777 = vunpack.c.l.b16 %v1480
        %v1778 = vunpack.c.h.b16 %v1480
        %v1779 = vunpack.c.l.b16 %v1481
        %v1780 = vunpack.c.h.b16 %v1481
        %v1781 = vunpack.c.l.b16 %v1482
        %v1782 = vunpack.c.h.b16 %v1482
        %v1783 = vunpack.c.l.b16 %v1483
        %v1784 = vunpack.c.h.b16 %v1483
        %v1785 = vunpack.c.l.b16 %v1484
        %v1786 = vunpack.c.h.b16 %v1484
        %v1787 = vunpack.c.l.b16 %v1485
        %v1788 = vunpack.c.h.b16 %v1485
        %v1789 = vunpack.c.l.b16 %v1486
        %v1790 = vunpack.c.h.b16 %v1486
        %v1791 = vunpack.c.l.b16 %v1487
        %v1792 = vunpack.c.h.b16 %v1487
        %v1793 = vunpack.c.l.b16 %v1488
        %v1794 = vunpack.c.h.b16 %v1488
        %v1795 = vunpack.c.l.b16 %v1489
        %v1796 = vunpack.c.h.b16 %v1489
        %v1797 = vunpack.c.l.b16 %v1490
        %v1798 = vunpack.c.h.b16 %v1490
        %v1799 = vunpack.c.l.b16 %v1491
        %v1800 = vunpack.c.h.b16 %v1491
        %v1801 = vunpack.c.l.b16 %v1492
        %v1802 = vunpack.c.h.b16 %v1492
        %v1803 = vunpack.c.l.b16 %v1493
        %v1804 = vunpack.c.h.b16 %v1493
        %v1805 = vunpack.c.l.b16 %v1494
        %v1806 = vunpack.c.h.b16 %v1494
        %v1807 = vunpack.c.l.b16 %v1495
        %v1808 = vunpack.c.h.b16 %v1495
        %v1809 = vunpack.c.l.b16 %v1496
        %v1810 = vunpack.c.h.b16 %v1496
        %v1811 = vunpack.c.l.b16 %v1497
        %v1812 = vunpack.c.h.b16 %v1497
        %v1813 = vunpack.c.l.b16 %v1498
        %v1814 = vunpack.c.h.b16 %v1498
        %v1815 = vunpack.c.l.b16 %v1499
        %v1816 = vunpack.c.h.b16 %v1499
        %v1817 = vunpack.c.l.b16 %v1500
        %v1818 = vunpack.c.h.b16 %v1500
        %v1819 = vunpack.c.l.b16 %v1501
        %v1820 = vunpack.c.h.b16 %v1501
        %v1821 = vunpack.c.l.b16 %v1502
        %v1822 = vunpack.c.h.b16 %v1502
        %v1823 = vunpack.c.l.b16 %v1503
        %v1824 = vunpack.c.h.b16 %v1503
        %v1825 = vunpack.c.l.b16 %v1504
        %v1826 = vunpack.c.h.b16 %v1504
        %v1827 = vunpack.c.l.b16 %v1505
        %v1828 = vunpack.c.h.b16 %v1505
        %v1829 = vunpack.c.l.b16 %v1506
        %v1830 = vunpack.c.h.b16 %v1506
        %v1831 = vunpack.c.l.b16 %v1507
        %v1832 = vunpack.c.h.b16 %v1507
        %v1833 = vunpack.c.l.b16 %v1508
        %v1834 = vunpack.c.h.b16 %v1508
        %v1835 = vunpack.c.l.b16 %v1509
        %v1836 = vunpack.c.h.b16 %v1509
        %v1837 = vunpack.c.l.b16 %v1510
        %v1838 = vunpack.c.h.b16 %v1510
        %v1839 = vunpack.c.l.b16 %v1511
        %v1840 = vunpack.c.h.b16 %v1511
        %v1841 = vunpack.c.l.b16 %v1512
        %v1842 = vunpack.c.h.b16 %v1512
        %v1843 = vunpack.c.l.b16 %v1513
        %v1844 = vunpack.c.h.b16 %v1513
        %v1845 = vunpack.c.l.b16 %v1514
        %v1846 = vunpack.c.h.b16 %v1514
        %v1847 = vunpack.c.l.b16 %v1515
        %v1848 = vunpack.c.h.b16 %v1515
        %v1849 = vunpack.c.l.b16 %v1516
        %v1850 = vunpack.c.h.b16 %v1516
        %v1851 = vunpack.c.l.b16 %v1517
        %v1852 = vunpack.c.h.b16 %v1517
        %v1853 = vunpack.c.l.b16 %v1518
        %v1854 = vunpack.c.h.b16 %v1518
        %v1855 = vunpack.c.l.b16 %v1519
        %v1856 = vunpack.c.h.b16 %v1519
        %v1857 = vunpack.c.l.b16 %v1520
        %v1858 = vunpack.c.h.b16 %v1520
        %v1859 = vunpack.c.l.b16 %v1521
        %v1860 = vunpack.c.h.b16 %v1521
        %v1861 = vunpack.c.l.b16 %v1522
        %v1862 = vunpack.c.h.b16 %v1522
        %v1863 = vunpack.c.l.b16 %v1523
        %v1864 = vunpack.c.h.b16 %v1523
        %v1865 = vunpack.c.l.b16 %v1524
        %v1866 = vunpack.c.h.b16 %v1524
        %v1867 = vunpack.c.l.b16 %v1525
        %v1868 = vunpack.c.h.b16 %v1525
        %v1869 = vunpack.c.l.b16 %v1526
        %v1870 = vunpack.c.h.b16 %v1526
        %v1871 = vunpack.c.l.b16 %v1527
        %v1872 = vunpack.c.h.b16 %v1527
        %v1873 = vunpack.c.l.b16 %v1528
        %v1874 = vunpack.c.h.b16 %v1528
        %v1875 = vunpack.c.l.b16 %v1529
        %v1876 = vunpack.c.h.b16 %v1529
        %v1877 = vunpack.c.l.b16 %v1530
        %v1878 = vunpack.c.h.b16 %v1530
        %v1879 = vunpack.c.l.b16 %v1531
        %v1880 = vunpack.c.h.b16 %v1531
        %v1881 = vunpack.c.l.b16 %v1532
        %v1882 = vunpack.c.h.b16 %v1532
        %v1883 = vunpack.c.l.b16 %v1533
        %v1884 = vunpack.c.h.b16 %v1533
        %v1885 = vunpack.c.l.b16 %v1534
        %v1886 = vunpack.c.h.b16 %v1534
        %v1887 = vunpack.c.l.b16 %v1535
        %v1888 = vunpack.c.h.b16 %v1535
        %v1889 = vunpack.c.l.b16 %v1536
        %v1890 = vunpack.c.h.b16 %v1536
        %v1891 = vunpack.c.l.b16 %v1537
        %v1892 = vunpack.c.h.b16 %v1537
        %v1893 = vunpack.c.l.b16 %v1538
        %v1894 = vunpack.c.h.b16 %v1538
        %v1895 = vunpack.c.l.b16 %v1539
        %v1896 = vunpack.c.h.b16 %v1539
        %v1897 = vunpack.c.l.b16 %v1540
        %v1898 = vunpack.c.h.b16 %v1540
        %v1899 = vunpack.c.l.b16 %v1541
        %v1900 = vunpack.c.h.b16 %v1541
        %v1901 = vunpack.c.l.b16 %v1542
        %v1902 = vunpack.c.h.b16 %v1542
        %v1903 = vunpack.c.l.b16 %v1543
        %v1904 = vunpack.c.h.b16 %v1543
        %v1905 = vunpack.c.l.b16 %v1544
        %v1906 = vunpack.c.h.b16 %v1544
        %v1907 = vunpack.c.l.b16 %v1545
        %v1908 = vunpack.c.h.b16 %v1545
        %v1909 = vunpack.c.l.b16 %v1546
        %v1910 = vunpack.c.h.b16 %v1546
        %v1911 = vunpack.c.l.b16 %v1547
        %v1912 = vunpack.c.h.b16 %v1547
        %v1913 = vunpack.c.l.b16 %v1548
        %v1914 = vunpack.c.h.b16 %v1548
        %v1915 = vunpack.c.l.b16 %v1549
        %v1916 = vunpack.c.h.b16 %v1549
        %v1917 = vunpack.c.l.b16 %v1550
        %v1918 = vunpack.c.h.b16 %v1550
        %v1919 = vunpack.c.l.b16 %v1551
        %v1920 = vunpack.c.h.b16 %v1551
        %v1921 = vunpack.c.l.b16 %v1552
        %v1922 = vunpack.c.h.b16 %v1552
        %v1923 = vunpack.c.l.b16 %v1553
        %v1924 = vunpack.c.h.b16 %v1553
        %v1925 = vunpack.c.l.b16 %v1554
        %v1926 = vunpack.c.h.b16 %v1554
        %v1927 = vunpack.c.l.b16 %v1555
        %v1928 = vunpack.c.h.b16 %v1555
        %v1929 = vunpack.c.l.b16 %v1556
        %v1930 = vunpack.c.h.b16 %v1556
        %v1931 = vunpack.c.l.b16 %v1557
        %v1932 = vunpack.c.h.b16 %v1557
        %v1933 = vunpack.c.l.b16 %v1558
        %v1934 = vunpack.c.h.b16 %v1558
        %v1935 = vunpack.c.l.b16 %v1559
        %v1936 = vunpack.c.h.b16 %v1559
        %v1937 = vunpack.c.l.b16 %v1560
        %v1938 = vunpack.c.h.b16 %v1560
        %v1939 = vunpack.c.l.b16 %v1561
        %v1940 = vunpack.c.h.b16 %v1561
        %v1941 = vunpack.c.l.b16 %v1562
        %v1942 = vunpack.c.h.b16 %v1562
        %v1943 = vunpack.c.l.b16 %v1563
        %v1944 = vunpack.c.h.b16 %v1563
        %v1945 = vunpack.c.l.b16 %v1564
        %v1946 = vunpack.c.h.b16 %v1564
        %v1947 = vunpack.c.l.b16 %v1565
        %v1948 = vunpack.c.h.b16 %v1565
        %v1949 = vunpack.c.l.b16 %v1566
        %v1950 = vunpack.c.h.b16 %v1566
        %v1951 = vpack.c.b16 %v1703, %v1695
        %v1952 = vpack.c.b16 %v1704, %v1696
        %v1953 = vpack.c.b16 %v1705, %v1697
        %v1954 = vpack.c.b16 %v1706, %v1698
        %v1955 = vpack.c.b16 %v1707, %v1699
        %v1956 = vpack.c.b16 %v1708, %v1700
        %v1957 = vpack.c.b16 %v1709, %v1701
        %v1958 = vpack.c.b16 %v1710, %v1702
        %v1959 = vpack.c.b16 %v1719, %v1711
        %v1960 = vpack.c.b16 %v1720, %v1712
        %v1961 = vpack.c.b16 %v1721, %v1713
        %v1962 = vpack.c.b16 %v1722, %v1714
        %v1963 = vpack.c.b16 %v1723, %v1715
        %v1964 = vpack.c.b16 %v1724, %v1716
        %v1965 = vpack.c.b16 %v1725, %v1717
        %v1966 = vpack.c.b16 %v1726, %v1718
        %v1967 = vpack.c.b16 %v1735, %v1727
        %v1968 = vpack.c.b16 %v1736, %v1728
        %v1969 = vpack.c.b16 %v1737, %v1729
        %v1970 = vpack.c.b16 %v1738, %v1730
        %v1971 = vpack.c.b16 %v1739, %v1731
        %v1972 = vpack.c.b16 %v1740, %v1732
        %v1973 = vpack.c.b16 %v1741, %v1733
        %v1974 = vpack.c.b16 %v1742, %v1734
        %v1975 = vpack.c.b16 %v1751, %v1743
        %v1976 = vpack.c.b16 %v1752, %v1744
        %v1977 = vpack.c.b16 %v1753, %v1745
        %v1978 = vpack.c.b16 %v1754, %v1746
        %v1979 = vpack.c.b16 %v1755, %v1747
        %v1980 = vpack.c.b16 %v1756, %v1748
        %v1981 = vpack.c.b16 %v1757, %v1749
        %v1982 = vpack.c.b16 %v1758, %v1750
        %v1983 = vpack.c.b16 %v1767, %v1759
        %v1984 = vpack.c.b16 %v1768, %v1760
        %v1985 = vpack.c.b16 %v1769, %v1761
        %v1986 = vpack.c.b16 %v1770, %v1762
        %v1987 = vpack.c.b16 %v1771, %v1763
        %v1988 = vpack.c.b16 %v1772, %v1764
        %v1989 = vpack.c.b16 %v1773, %v1765
        %v1990 = vpack.c.b16 %v1774, %v1766
        %v1991 = vpack.c.b16 %v1783, %v1775
        %v1992 = vpack.c.b16 %v1784, %v1776
        %v1993 = vpack.c.b16 %v1785, %v1777
        %v1994 = vpack.c.b16 %v1786, %v1778
        %v1995 = vpack.c.b16 %v1787, %v1779
        %v1996 = vpack.c.b16 %v1788, %v1780
        %v1997 = vpack.c.b16 %v1789, %v1781
        %v1998 = vpack.c.b16 %v1790, %v1782
        %v1999 = vpack.c.b16 %v1799, %v1791
        %v2000 = vpack.c.b16 %v1800, %v1792
        %v2001 = vpack.c.b16 %v1801, %v1793
        %v2002 = vpack.c.b16 %v1802, %v1794
        %v2003 = vpack.c.b16 %v1803, %v1795
        %v2004 = vpack.c.b16 %v1804, %v1796
        %v2005 = vpack.c.b16 %v1805, %v1797
        %v2006 = vpack.c.b16 %v1806, %v1798
        %v2007 = vpack.c.b16 %v1815, %v1807
        %v2008 = vpack.c.b16 %v1816, %v1808
        %v2009 = vpack.c.b16 %v1817, %v1809
        %v2010 = vpack.c.b16 %v1818, %v1810
        %v2011 = vpack.c.b16 %v1819, %v1811
        %v2012 = vpack.c.b16 %v1820, %v1812
        %v2013 = vpack.c.b16 %v1821, %v1813
        %v2014 = vpack.c.b16 %v1822, %v1814
        %v2015 = vpack.c.b16 %v1831, %v1823
        %v2016 = vpack.c.b16 %v1832, %v1824
        %v2017 = vpack.c.b16 %v1833, %v1825
        %v2018 = vpack.c.b16 %v1834, %v1826
        %v2019 = vpack.c.b16 %v1835, %v1827
        %v2020 = vpack.c.b16 %v1836, %v1828
        %v2021 = vpack.c.b16 %v1837, %v1829
        %v2022 = vpack.c.b16 %v1838, %v1830
        %v2023 = vpack.c.b16 %v1847, %v1839
        %v2024 = vpack.c.b16 %v1848, %v1840
        %v2025 = vpack.c.b16 %v1849, %v1841
        %v2026 = vpack.c.b16 %v1850, %v1842
        %v2027 = vpack.c.b16 %v1851, %v1843
        %v2028 = vpack.c.b16 %v1852, %v1844
        %v2029 = vpack.c.b16 %v1853, %v1845
        %v2030 = vpack.c.b16 %v1854, %v1846
        %v2031 = vpack.c.b16 %v1863, %v1855
        %v2032 = vpack.c.b16 %v1864, %v1856
        %v2033 = vpack.c.b16 %v1865, %v1857
        %v2034 = vpack.c.b16 %v1866, %v1858
        %v2035 = vpack.c.b16 %v1867, %v1859
        %v2036 = vpack.c.b16 %v1868, %v1860
        %v2037 = vpack.c.b16 %v1869, %v1861
        %v2038 = vpack.c.b16 %v1870, %v1862
        %v2039 = vpack.c.b16 %v1879, %v1871
        %v2040 = vpack.c.b16 %v1880, %v1872
        %v2041 = vpack.c.b16 %v1881, %v1873
        %v2042 = vpack.c.b16 %v1882, %v1874
        %v2043 = vpack.c.b16 %v1883, %v1875
        %v2044 = vpack.c.b16 %v1884, %v1876
        %v2045 = vpack.c.b16 %v1885, %v1877
        %v2046 = vpack.c.b16 %v1886, %v1878
        %v2047 = vpack.c.b16 %v1895, %v1887
        %v2048 = vpack.c.b16 %v1896, %v1888
        %v2049 = vpack.c.b16 %v1897, %v1889
        %v2050 = vpack.c.b16 %v1898, %v1890
        %v2051 = vpack.c.b16 %v1899, %v1891
        %v2052 = vpack.c.b16 %v1900, %v1892
        %v2053 = vpack.c.b16 %v1901, %v1893
        %v2054 = vpack.c.b16 %v1902, %v1894
        %v2055 = vpack.c.b16 %v1911, %v1903
        %v2056 = vpack.c.b16 %v1912, %v1904
        %v2057 = vpack.c.b16 %v1913, %v1905
        %v2058 = vpack.c.b16 %v1914, %v1906
        %v2059 = vpack.c.b16 %v1915, %v1907
        %v2060 = vpack.c.b16 %v1916, %v1908
        %v2061 = vpack.c.b16 %v1917, %v1909
        %v2062 = vpack.c.b16 %v1918, %v1910
        %v2063 = vpack.c.b16 %v1927, %v1919
        %v2064 = vpack.c.b16 %v1928, %v1920
        %v2065 = vpack.c.b16 %v1929, %v1921
        %v2066 = vpack.c.b16 %v1930, %v1922
        %v2067 = vpack.c.b16 %v1931, %v1923
        %v2068 = vpack.c.b16 %v1932, %v1924
        %v2069 = vpack.c.b16 %v1933, %v1925
        %v2070 = vpack.c.b16 %v1934, %v1926
        %v2071 = vpack.c.b16 %v1943, %v1935
        %v2072 = vpack.c.b16 %v1944, %v1936
        %v2073 = vpack.c.b16 %v1945, %v1937
        %v2074 = vpack.c.b16 %v1946, %v1938
        %v2075 = vpack.c.b16 %v1947, %v1939
        %v2076 = vpack.c.b16 %v1948, %v1940
        %v2077 = vpack.c.b16 %v1949, %v1941
        %v2078 = vpack.c.b16 %v1950, %v1942
        %2207 = vmatprep.subr.bf16.mxu0 %v1952
        %2208 = vmatpush1.bf16.msra.mxu0 %v1951
        %2209 = vmatprep.subr.bf16.mxu0 %v1960
        %2210 = vmatpush1.bf16.msra.mxu0 %v1959
        %2211 = vmatprep.subr.bf16.mxu0 %v1968
        %2212 = vmatpush1.bf16.msra.mxu0 %v1967
        %2213 = vmatprep.subr.bf16.mxu0 %v1976
        %2214 = vmatpush1.bf16.msra.mxu0 %v1975
        %2215 = vmatprep.subr.bf16.mxu0 %v1984
        %2216 = vmatpush1.bf16.msra.mxu0 %v1983
        %2217 = vmatprep.subr.bf16.mxu0 %v1992
        %2218 = vmatpush1.bf16.msra.mxu0 %v1991
        %2219 = vmatprep.subr.bf16.mxu0 %v2000
        %2220 = vmatpush1.bf16.msra.mxu0 %v1999
        %2221 = vmatprep.subr.bf16.mxu0 %v2008
        %2222 = vmatpush1.bf16.msra.mxu0 %v2007
        %2223 = vmatprep.subr.bf16.mxu0 %v2016
        %2224 = vmatpush1.bf16.msra.mxu0 %v2015
        %2225 = vmatprep.subr.bf16.mxu0 %v2024
        %2226 = vmatpush1.bf16.msra.mxu0 %v2023
        %2227 = vmatprep.subr.bf16.mxu0 %v2032
        %2228 = vmatpush1.bf16.msra.mxu0 %v2031
        %2229 = vmatprep.subr.bf16.mxu0 %v2040
        %2230 = vmatpush1.bf16.msra.mxu0 %v2039
        %2231 = vmatprep.subr.bf16.mxu0 %v2048
        %2232 = vmatpush1.bf16.msra.mxu0 %v2047
        %2233 = vmatprep.subr.bf16.mxu0 %v2056
        %2234 = vmatpush1.bf16.msra.mxu0 %v2055
        %2235 = vmatprep.subr.bf16.mxu0 %v2064
        %2236 = vmatpush1.bf16.msra.mxu0 %v2063
        %2237 = vmatprep.subr.bf16.mxu0 %v2072
        %2238 = vmatpush1.bf16.msra.mxu0 %v2071
        %2239 = vmatprep.mubr.bf16.mxu0 %v1438
        %2240 = vmatmul.mubr.bf16.gmra.mrb[0].mxu0 %v1437
        %v2241 = vpop.f32.mrb[0].mxu0
        %v2242 = vadd.f32 0.0, %v2241
        %v2243 = vpop.f32.mrb[0].mxu0
        %v2244 = vadd.f32 0.0, %v2243
        %v2245 = vpop.f32.mrb[0].mxu0
        %v2246 = vpop.f32.mrb[0].mxu0
        %2247 = vdwg.mxu0
        %2248 = vmatprep.subr.bf16.mxu0 %v1954
        %2249 = vmatpush1.bf16.msra.mxu0 %v1953
        %2250 = vmatprep.subr.bf16.mxu0 %v1962
        %2251 = vmatpush1.bf16.msra.mxu0 %v1961
        %2252 = vmatprep.subr.bf16.mxu0 %v1970
        %2253 = vmatpush1.bf16.msra.mxu0 %v1969
        %2254 = vmatprep.subr.bf16.mxu0 %v1978
        %2255 = vmatpush1.bf16.msra.mxu0 %v1977
        %2256 = vmatprep.subr.bf16.mxu0 %v1986
        %2257 = vmatpush1.bf16.msra.mxu0 %v1985
        %2258 = vmatprep.subr.bf16.mxu0 %v1994
        %2259 = vmatpush1.bf16.msra.mxu0 %v1993
        %2260 = vmatprep.subr.bf16.mxu0 %v2002
        %2261 = vmatpush1.bf16.msra.mxu0 %v2001
        %2262 = vmatprep.subr.bf16.mxu0 %v2010
        %2263 = vmatpush1.bf16.msra.mxu0 %v2009
        %2264 = vmatprep.subr.bf16.mxu0 %v2018
        %2265 = vmatpush1.bf16.msra.mxu0 %v2017
        %2266 = vmatprep.subr.bf16.mxu0 %v2026
        %2267 = vmatpush1.bf16.msra.mxu0 %v2025
        %2268 = vmatprep.subr.bf16.mxu0 %v2034
        %2269 = vmatpush1.bf16.msra.mxu0 %v2033
        %2270 = vmatprep.subr.bf16.mxu0 %v2042
        %2271 = vmatpush1.bf16.msra.mxu0 %v2041
        %2272 = vmatprep.subr.bf16.mxu0 %v2050
        %2273 = vmatpush1.bf16.msra.mxu0 %v2049
        %2274 = vmatprep.subr.bf16.mxu0 %v2058
        %2275 = vmatpush1.bf16.msra.mxu0 %v2057
        %2276 = vmatprep.subr.bf16.mxu0 %v2066
        %2277 = vmatpush1.bf16.msra.mxu0 %v2065
        %2278 = vmatprep.subr.bf16.mxu0 %v2074
        %2279 = vmatpush1.bf16.msra.mxu0 %v2073
        %2280 = vmatprep.mubr.bf16.mxu0 %v1438
        %2281 = vmatmul.mubr.bf16.gmra.mrb[0].mxu0 %v1437
        %v2282 = vpop.f32.mrb[0].mxu0
        %v2283 = vadd.f32 0.0, %v2282
        %v2284 = vpop.f32.mrb[0].mxu0
        %v2285 = vadd.f32 0.0, %v2284
        %v2286 = vpop.f32.mrb[0].mxu0
        %v2287 = vpop.f32.mrb[0].mxu0
        %2288 = vdwg.mxu0
        %2289 = vmatprep.subr.bf16.mxu0 %v1956
        %2290 = vmatpush1.bf16.msra.mxu0 %v1955
        %2291 = vmatprep.subr.bf16.mxu0 %v1964
        %2292 = vmatpush1.bf16.msra.mxu0 %v1963
        %2293 = vmatprep.subr.bf16.mxu0 %v1972
        %2294 = vmatpush1.bf16.msra.mxu0 %v1971
        %2295 = vmatprep.subr.bf16.mxu0 %v1980
        %2296 = vmatpush1.bf16.msra.mxu0 %v1979
        %2297 = vmatprep.subr.bf16.mxu0 %v1988
        %2298 = vmatpush1.bf16.msra.mxu0 %v1987
        %2299 = vmatprep.subr.bf16.mxu0 %v1996
        %2300 = vmatpush1.bf16.msra.mxu0 %v1995
        %2301 = vmatprep.subr.bf16.mxu0 %v2004
        %2302 = vmatpush1.bf16.msra.mxu0 %v2003
        %2303 = vmatprep.subr.bf16.mxu0 %v2012
        %2304 = vmatpush1.bf16.msra.mxu0 %v2011
        %2305 = vmatprep.subr.bf16.mxu0 %v2020
        %2306 = vmatpush1.bf16.msra.mxu0 %v2019
        %2307 = vmatprep.subr.bf16.mxu0 %v2028
        %2308 = vmatpush1.bf16.msra.mxu0 %v2027
        %2309 = vmatprep.subr.bf16.mxu0 %v2036
        %2310 = vmatpush1.bf16.msra.mxu0 %v2035
        %2311 = vmatprep.subr.bf16.mxu0 %v2044
        %2312 = vmatpush1.bf16.msra.mxu0 %v2043
        %2313 = vmatprep.subr.bf16.mxu0 %v2052
        %2314 = vmatpush1.bf16.msra.mxu0 %v2051
        %2315 = vmatprep.subr.bf16.mxu0 %v2060
        %2316 = vmatpush1.bf16.msra.mxu0 %v2059
        %2317 = vmatprep.subr.bf16.mxu0 %v2068
        %2318 = vmatpush1.bf16.msra.mxu0 %v2067
        %2319 = vmatprep.subr.bf16.mxu0 %v2076
        %2320 = vmatpush1.bf16.msra.mxu0 %v2075
        %2321 = vmatprep.mubr.bf16.mxu0 %v1438
        %2322 = vmatmul.mubr.bf16.gmra.mrb[0].mxu0 %v1437
        %v2323 = vpop.f32.mrb[0].mxu0
        %v2324 = vadd.f32 0.0, %v2323
        %v2325 = vpop.f32.mrb[0].mxu0
        %v2326 = vadd.f32 0.0, %v2325
        %v2327 = vpop.f32.mrb[0].mxu0
        %v2328 = vpop.f32.mrb[0].mxu0
        %2329 = vdwg.mxu0
        %2330 = vmatprep.subr.bf16.mxu0 %v1958
        %2331 = vmatpush1.bf16.msra.mxu0 %v1957
        %2332 = vmatprep.subr.bf16.mxu0 %v1966
        %2333 = vmatpush1.bf16.msra.mxu0 %v1965
        %2334 = vmatprep.subr.bf16.mxu0 %v1974
        %2335 = vmatpush1.bf16.msra.mxu0 %v1973
        %2336 = vmatprep.subr.bf16.mxu0 %v1982
        %2337 = vmatpush1.bf16.msra.mxu0 %v1981
        %2338 = vmatprep.subr.bf16.mxu0 %v1990
        %2339 = vmatpush1.bf16.msra.mxu0 %v1989
        %2340 = vmatprep.subr.bf16.mxu0 %v1998
        %2341 = vmatpush1.bf16.msra.mxu0 %v1997
        %2342 = vmatprep.subr.bf16.mxu0 %v2006
        %2343 = vmatpush1.bf16.msra.mxu0 %v2005
        %2344 = vmatprep.subr.bf16.mxu0 %v2014
        %2345 = vmatpush1.bf16.msra.mxu0 %v2013
        %2346 = vmatprep.subr.bf16.mxu0 %v2022
        %2347 = vmatpush1.bf16.msra.mxu0 %v2021
        %2348 = vmatprep.subr.bf16.mxu0 %v2030
        %2349 = vmatpush1.bf16.msra.mxu0 %v2029
        %2350 = vmatprep.subr.bf16.mxu0 %v2038
        %2351 = vmatpush1.bf16.msra.mxu0 %v2037
        %2352 = vmatprep.subr.bf16.mxu0 %v2046
        %2353 = vmatpush1.bf16.msra.mxu0 %v2045
        %2354 = vmatprep.subr.bf16.mxu0 %v2054
        %2355 = vmatpush1.bf16.msra.mxu0 %v2053
        %2356 = vmatprep.subr.bf16.mxu0 %v2062
        %2357 = vmatpush1.bf16.msra.mxu0 %v2061
        %2358 = vmatprep.subr.bf16.mxu0 %v2070
        %2359 = vmatpush1.bf16.msra.mxu0 %v2069
        %2360 = vmatprep.subr.bf16.mxu0 %v2078
        %2361 = vmatpush1.bf16.msra.mxu0 %v2077
        %2362 = vmatprep.mubr.bf16.mxu0 %v1438
        %2363 = vmatmul.mubr.bf16.gmra.mrb[0].mxu0 %v1437
        %v2364 = vpop.f32.mrb[0].mxu0
        %v2365 = vadd.f32 0.0, %v2364
        %v2366 = vpop.f32.mrb[0].mxu0
        %v2367 = vadd.f32 0.0, %v2366
        %v2368 = vpop.f32.mrb[0].mxu0
        %v2369 = vpop.f32.mrb[0].mxu0
        %2370 = vdwg.mxu0
        %v2371 = vxor.u32 %v2242, 2147483648
        %v2372 = vxor.u32 %v2244, 2147483648
        %v2373 = vxor.u32 %v2283, 2147483648
        %v2374 = vxor.u32 %v2285, 2147483648
        %v2375 = vmul.f32 %v2371, 1.442695
        %v2376 = vpow.pop %v2375
        %v2377 = vmul.f32 %v2372, 1.442695
        %v2378 = vpow.pop %v2377
        %v2379 = vmul.f32 %v2373, 1.442695
        %v2380 = vpow.pop %v2379
        %v2381 = vmul.f32 %v2374, 1.442695
        %v2382 = vpow.pop %v2381
        %v2383 = vadd.f32 %v2376, 1.0
        %v2384 = vadd.f32 %v2378, 1.0
        %v2385 = vadd.f32 %v2380, 1.0
        %v2386 = vadd.f32 %v2382, 1.0
        %v2387 = vrcp.pop %v2383
        %v2388 = vmul.f32 1.0, %v2387
        %v2389 = vrcp.pop %v2384
        %v2390 = vmul.f32 1.0, %v2389
        %v2391 = vrcp.pop %v2385
        %v2392 = vmul.f32 1.0, %v2391
        %v2393 = vrcp.pop %v2386
        %v2394 = vmul.f32 1.0, %v2393
        %v2395 = vmul.f32 %v2242, %v2388
        %v2396 = vmul.f32 %v2244, %v2390
        %v2397 = vmul.f32 %v2283, %v2392
        %v2398 = vmul.f32 %v2285, %v2394
        %v2399 = vmul.f32 %v2395, %v2324
        %v2400 = vmul.f32 %v2396, %v2326
        %v2401 = vmul.f32 %v2397, %v2365
        %v2402 = vmul.f32 %v2398, %v2367
        %v2403 = vpack.c.bf16 %v2399, %v2399
        %v2404 = vpack.c.bf16 %v2400, %v2400
        %v2405 = vpack.c.bf16 %v2401, %v2401
        %v2406 = vpack.c.bf16 %v2402, %v2402
        %v2407 = vld [vmem:[#allocation11] sm:$0xff]
        %v2408 = vld [vmem:[#allocation11 + $0x8] sm:$0xff]
        %v2409 = vld [vmem:[#allocation11 + $0x10] sm:$0xff]
        %v2410 = vld [vmem:[#allocation11 + $0x18] sm:$0xff]
        %v2411 = vld [vmem:[#allocation11 + $0x20] sm:$0xff]
        %v2412 = vld [vmem:[#allocation11 + $0x28] sm:$0xff]
        %v2413 = vld [vmem:[#allocation11 + $0x30] sm:$0xff]
        %v2414 = vld [vmem:[#allocation11 + $0x38] sm:$0xff]
        %v2415 = vld [vmem:[#allocation11 + $0x40] sm:$0xff]
        %v2416 = vld [vmem:[#allocation11 + $0x48] sm:$0xff]
        %v2417 = vld [vmem:[#allocation11 + $0x50] sm:$0xff]
        %v2418 = vld [vmem:[#allocation11 + $0x58] sm:$0xff]
        %v2419 = vld [vmem:[#allocation11 + $0x60] sm:$0xff]
        %v2420 = vld [vmem:[#allocation11 + $0x68] sm:$0xff]
        %v2421 = vld [vmem:[#allocation11 + $0x70] sm:$0xff]
        %v2422 = vld [vmem:[#allocation11 + $0x78] sm:$0xff]
        %v2423 = vld [vmem:[#allocation11 + $0x80] sm:$0xff]
        %v2424 = vld [vmem:[#allocation11 + $0x88] sm:$0xff]
        %v2425 = vld [vmem:[#allocation11 + $0x90] sm:$0xff]
        %v2426 = vld [vmem:[#allocation11 + $0x98] sm:$0xff]
        %v2427 = vld [vmem:[#allocation11 + $0xa0] sm:$0xff]
        %v2428 = vld [vmem:[#allocation11 + $0xa8] sm:$0xff]
        %v2429 = vld [vmem:[#allocation11 + $0xb0] sm:$0xff]
        %v2430 = vld [vmem:[#allocation11 + $0xb8] sm:$0xff]
        %v2431 = vld [vmem:[#allocation11 + $0xc0] sm:$0xff]
        %v2432 = vld [vmem:[#allocation11 + $0xc8] sm:$0xff]
        %v2433 = vld [vmem:[#allocation11 + $0xd0] sm:$0xff]
        %v2434 = vld [vmem:[#allocation11 + $0xd8] sm:$0xff]
        %v2435 = vld [vmem:[#allocation11 + $0xe0] sm:$0xff]
        %v2436 = vld [vmem:[#allocation11 + $0xe8] sm:$0xff]
        %v2437 = vld [vmem:[#allocation11 + $0xf0] sm:$0xff]
        %v2438 = vld [vmem:[#allocation11 + $0xf8] sm:$0xff]
        %v2439 = vld [vmem:[#allocation11 + $0x100] sm:$0xff]
        %v2440 = vld [vmem:[#allocation11 + $0x108] sm:$0xff]
        %v2441 = vld [vmem:[#allocation11 + $0x110] sm:$0xff]
        %v2442 = vld [vmem:[#allocation11 + $0x118] sm:$0xff]
        %v2443 = vld [vmem:[#allocation11 + $0x120] sm:$0xff]
        %v2444 = vld [vmem:[#allocation11 + $0x128] sm:$0xff]
        %v2445 = vld [vmem:[#allocation11 + $0x130] sm:$0xff]
        %v2446 = vld [vmem:[#allocation11 + $0x138] sm:$0xff]
        %v2447 = vld [vmem:[#allocation11 + $0x140] sm:$0xff]
        %v2448 = vld [vmem:[#allocation11 + $0x148] sm:$0xff]
        %v2449 = vld [vmem:[#allocation11 + $0x150] sm:$0xff]
        %v2450 = vld [vmem:[#allocation11 + $0x158] sm:$0xff]
        %v2451 = vld [vmem:[#allocation11 + $0x160] sm:$0xff]
        %v2452 = vld [vmem:[#allocation11 + $0x168] sm:$0xff]
        %v2453 = vld [vmem:[#allocation11 + $0x170] sm:$0xff]
        %v2454 = vld [vmem:[#allocation11 + $0x178] sm:$0xff]
        %v2455 = vld [vmem:[#allocation11 + $0x180] sm:$0xff]
        %v2456 = vld [vmem:[#allocation11 + $0x188] sm:$0xff]
        %v2457 = vld [vmem:[#allocation11 + $0x190] sm:$0xff]
        %v2458 = vld [vmem:[#allocation11 + $0x198] sm:$0xff]
        %v2459 = vld [vmem:[#allocation11 + $0x1a0] sm:$0xff]
        %v2460 = vld [vmem:[#allocation11 + $0x1a8] sm:$0xff]
        %v2461 = vld [vmem:[#allocation11 + $0x1b0] sm:$0xff]
        %v2462 = vld [vmem:[#allocation11 + $0x1b8] sm:$0xff]
        %v2463 = vld [vmem:[#allocation11 + $0x1c0] sm:$0xff]
        %v2464 = vld [vmem:[#allocation11 + $0x1c8] sm:$0xff]
        %v2465 = vld [vmem:[#allocation11 + $0x1d0] sm:$0xff]
        %v2466 = vld [vmem:[#allocation11 + $0x1d8] sm:$0xff]
        %v2467 = vld [vmem:[#allocation11 + $0x1e0] sm:$0xff]
        %v2468 = vld [vmem:[#allocation11 + $0x1e8] sm:$0xff]
        %v2469 = vld [vmem:[#allocation11 + $0x1f0] sm:$0xff]
        %v2470 = vld [vmem:[#allocation11 + $0x1f8] sm:$0xff]
        %v2535 = vunpack.c.l.b16 %v2407
        %v2536 = vunpack.c.h.b16 %v2407
        %v2537 = vunpack.c.l.b16 %v2408
        %v2538 = vunpack.c.h.b16 %v2408
        %v2539 = vunpack.c.l.b16 %v2409
        %v2540 = vunpack.c.h.b16 %v2409
        %v2541 = vunpack.c.l.b16 %v2410
        %v2542 = vunpack.c.h.b16 %v2410
        %v2543 = vunpack.c.l.b16 %v2411
        %v2544 = vunpack.c.h.b16 %v2411
        %v2545 = vunpack.c.l.b16 %v2412
        %v2546 = vunpack.c.h.b16 %v2412
        %v2547 = vunpack.c.l.b16 %v2413
        %v2548 = vunpack.c.h.b16 %v2413
        %v2549 = vunpack.c.l.b16 %v2414
        %v2550 = vunpack.c.h.b16 %v2414
        %v2551 = vunpack.c.l.b16 %v2415
        %v2552 = vunpack.c.h.b16 %v2415
        %v2553 = vunpack.c.l.b16 %v2416
        %v2554 = vunpack.c.h.b16 %v2416
        %v2555 = vunpack.c.l.b16 %v2417
        %v2556 = vunpack.c.h.b16 %v2417
        %v2557 = vunpack.c.l.b16 %v2418
        %v2558 = vunpack.c.h.b16 %v2418
        %v2559 = vunpack.c.l.b16 %v2419
        %v2560 = vunpack.c.h.b16 %v2419
        %v2561 = vunpack.c.l.b16 %v2420
        %v2562 = vunpack.c.h.b16 %v2420
        %v2563 = vunpack.c.l.b16 %v2421
        %v2564 = vunpack.c.h.b16 %v2421
        %v2565 = vunpack.c.l.b16 %v2422
        %v2566 = vunpack.c.h.b16 %v2422
        %v2567 = vunpack.c.l.b16 %v2423
        %v2568 = vunpack.c.h.b16 %v2423
        %v2569 = vunpack.c.l.b16 %v2424
        %v2570 = vunpack.c.h.b16 %v2424
        %v2571 = vunpack.c.l.b16 %v2425
        %v2572 = vunpack.c.h.b16 %v2425
        %v2573 = vunpack.c.l.b16 %v2426
        %v2574 = vunpack.c.h.b16 %v2426
        %v2575 = vunpack.c.l.b16 %v2427
        %v2576 = vunpack.c.h.b16 %v2427
        %v2577 = vunpack.c.l.b16 %v2428
        %v2578 = vunpack.c.h.b16 %v2428
        %v2579 = vunpack.c.l.b16 %v2429
        %v2580 = vunpack.c.h.b16 %v2429
        %v2581 = vunpack.c.l.b16 %v2430
        %v2582 = vunpack.c.h.b16 %v2430
        %v2583 = vunpack.c.l.b16 %v2431
        %v2584 = vunpack.c.h.b16 %v2431
        %v2585 = vunpack.c.l.b16 %v2432
        %v2586 = vunpack.c.h.b16 %v2432
        %v2587 = vunpack.c.l.b16 %v2433
        %v2588 = vunpack.c.h.b16 %v2433
        %v2589 = vunpack.c.l.b16 %v2434
        %v2590 = vunpack.c.h.b16 %v2434
        %v2591 = vunpack.c.l.b16 %v2435
        %v2592 = vunpack.c.h.b16 %v2435
        %v2593 = vunpack.c.l.b16 %v2436
        %v2594 = vunpack.c.h.b16 %v2436
        %v2595 = vunpack.c.l.b16 %v2437
        %v2596 = vunpack.c.h.b16 %v2437
        %v2597 = vunpack.c.l.b16 %v2438
        %v2598 = vunpack.c.h.b16 %v2438
        %v2599 = vunpack.c.l.b16 %v2439
        %v2600 = vunpack.c.h.b16 %v2439
        %v2601 = vunpack.c.l.b16 %v2440
        %v2602 = vunpack.c.h.b16 %v2440
        %v2603 = vunpack.c.l.b16 %v2441
        %v2604 = vunpack.c.h.b16 %v2441
        %v2605 = vunpack.c.l.b16 %v2442
        %v2606 = vunpack.c.h.b16 %v2442
        %v2607 = vunpack.c.l.b16 %v2443
        %v2608 = vunpack.c.h.b16 %v2443
        %v2609 = vunpack.c.l.b16 %v2444
        %v2610 = vunpack.c.h.b16 %v2444
        %v2611 = vunpack.c.l.b16 %v2445
        %v2612 = vunpack.c.h.b16 %v2445
        %v2613 = vunpack.c.l.b16 %v2446
        %v2614 = vunpack.c.h.b16 %v2446
        %v2615 = vunpack.c.l.b16 %v2447
        %v2616 = vunpack.c.h.b16 %v2447
        %v2617 = vunpack.c.l.b16 %v2448
        %v2618 = vunpack.c.h.b16 %v2448
        %v2619 = vunpack.c.l.b16 %v2449
        %v2620 = vunpack.c.h.b16 %v2449
        %v2621 = vunpack.c.l.b16 %v2450
        %v2622 = vunpack.c.h.b16 %v2450
        %v2623 = vunpack.c.l.b16 %v2451
        %v2624 = vunpack.c.h.b16 %v2451
        %v2625 = vunpack.c.l.b16 %v2452
        %v2626 = vunpack.c.h.b16 %v2452
        %v2627 = vunpack.c.l.b16 %v2453
        %v2628 = vunpack.c.h.b16 %v2453
        %v2629 = vunpack.c.l.b16 %v2454
        %v2630 = vunpack.c.h.b16 %v2454
        %v2631 = vunpack.c.l.b16 %v2455
        %v2632 = vunpack.c.h.b16 %v2455
        %v2633 = vunpack.c.l.b16 %v2456
        %v2634 = vunpack.c.h.b16 %v2456
        %v2635 = vunpack.c.l.b16 %v2457
        %v2636 = vunpack.c.h.b16 %v2457
        %v2637 = vunpack.c.l.b16 %v2458
        %v2638 = vunpack.c.h.b16 %v2458
        %v2639 = vunpack.c.l.b16 %v2459
        %v2640 = vunpack.c.h.b16 %v2459
        %v2641 = vunpack.c.l.b16 %v2460
        %v2642 = vunpack.c.h.b16 %v2460
        %v2643 = vunpack.c.l.b16 %v2461
        %v2644 = vunpack.c.h.b16 %v2461
        %v2645 = vunpack.c.l.b16 %v2462
        %v2646 = vunpack.c.h.b16 %v2462
        %v2647 = vunpack.c.l.b16 %v2463
        %v2648 = vunpack.c.h.b16 %v2463
        %v2649 = vunpack.c.l.b16 %v2464
        %v2650 = vunpack.c.h.b16 %v2464
        %v2651 = vunpack.c.l.b16 %v2465
        %v2652 = vunpack.c.h.b16 %v2465
        %v2653 = vunpack.c.l.b16 %v2466
        %v2654 = vunpack.c.h.b16 %v2466
        %v2655 = vunpack.c.l.b16 %v2467
        %v2656 = vunpack.c.h.b16 %v2467
        %v2657 = vunpack.c.l.b16 %v2468
        %v2658 = vunpack.c.h.b16 %v2468
        %v2659 = vunpack.c.l.b16 %v2469
        %v2660 = vunpack.c.h.b16 %v2469
        %v2661 = vunpack.c.l.b16 %v2470
        %v2662 = vunpack.c.h.b16 %v2470
        %v2663 = vpack.c.b16 %v2537, %v2535
        %v2664 = vpack.c.b16 %v2538, %v2536
        %v2665 = vpack.c.b16 %v2541, %v2539
        %v2666 = vpack.c.b16 %v2542, %v2540
        %v2667 = vpack.c.b16 %v2545, %v2543
        %v2668 = vpack.c.b16 %v2546, %v2544
        %v2669 = vpack.c.b16 %v2549, %v2547
        %v2670 = vpack.c.b16 %v2550, %v2548
        %v2671 = vpack.c.b16 %v2553, %v2551
        %v2672 = vpack.c.b16 %v2554, %v2552
        %v2673 = vpack.c.b16 %v2557, %v2555
        %v2674 = vpack.c.b16 %v2558, %v2556
        %v2675 = vpack.c.b16 %v2561, %v2559
        %v2676 = vpack.c.b16 %v2562, %v2560
        %v2677 = vpack.c.b16 %v2565, %v2563
        %v2678 = vpack.c.b16 %v2566, %v2564
        %v2679 = vpack.c.b16 %v2569, %v2567
        %v2680 = vpack.c.b16 %v2570, %v2568
        %v2681 = vpack.c.b16 %v2573, %v2571
        %v2682 = vpack.c.b16 %v2574, %v2572
        %v2683 = vpack.c.b16 %v2577, %v2575
        %v2684 = vpack.c.b16 %v2578, %v2576
        %v2685 = vpack.c.b16 %v2581, %v2579
        %v2686 = vpack.c.b16 %v2582, %v2580
        %v2687 = vpack.c.b16 %v2585, %v2583
        %v2688 = vpack.c.b16 %v2586, %v2584
        %v2689 = vpack.c.b16 %v2589, %v2587
        %v2690 = vpack.c.b16 %v2590, %v2588
        %v2691 = vpack.c.b16 %v2593, %v2591
        %v2692 = vpack.c.b16 %v2594, %v2592
        %v2693 = vpack.c.b16 %v2597, %v2595
        %v2694 = vpack.c.b16 %v2598, %v2596
        %v2695 = vpack.c.b16 %v2601, %v2599
        %v2696 = vpack.c.b16 %v2602, %v2600
        %v2697 = vpack.c.b16 %v2605, %v2603
        %v2698 = vpack.c.b16 %v2606, %v2604
        %v2699 = vpack.c.b16 %v2609, %v2607
        %v2700 = vpack.c.b16 %v2610, %v2608
        %v2701 = vpack.c.b16 %v2613, %v2611
        %v2702 = vpack.c.b16 %v2614, %v2612
        %v2703 = vpack.c.b16 %v2617, %v2615
        %v2704 = vpack.c.b16 %v2618, %v2616
        %v2705 = vpack.c.b16 %v2621, %v2619
        %v2706 = vpack.c.b16 %v2622, %v2620
        %v2707 = vpack.c.b16 %v2625, %v2623
        %v2708 = vpack.c.b16 %v2626, %v2624
        %v2709 = vpack.c.b16 %v2629, %v2627
        %v2710 = vpack.c.b16 %v2630, %v2628
        %v2711 = vpack.c.b16 %v2633, %v2631
        %v2712 = vpack.c.b16 %v2634, %v2632
        %v2713 = vpack.c.b16 %v2637, %v2635
        %v2714 = vpack.c.b16 %v2638, %v2636
        %v2715 = vpack.c.b16 %v2641, %v2639
        %v2716 = vpack.c.b16 %v2642, %v2640
        %v2717 = vpack.c.b16 %v2645, %v2643
        %v2718 = vpack.c.b16 %v2646, %v2644
        %v2719 = vpack.c.b16 %v2649, %v2647
        %v2720 = vpack.c.b16 %v2650, %v2648
        %v2721 = vpack.c.b16 %v2653, %v2651
        %v2722 = vpack.c.b16 %v2654, %v2652
        %v2723 = vpack.c.b16 %v2657, %v2655
        %v2724 = vpack.c.b16 %v2658, %v2656
        %v2725 = vpack.c.b16 %v2661, %v2659
        %v2726 = vpack.c.b16 %v2662, %v2660
        %2791 = vmatprep.subr.bf16.mxu0 %v2664
        %2792 = vmatpush1.bf16.msra.mxu0 %v2663
        %2793 = vmatprep.subr.bf16.mxu0 %v2666
        %2794 = vmatpush1.bf16.msra.mxu0 %v2665
        %2795 = vmatprep.subr.bf16.mxu0 %v2668
        %2796 = vmatpush1.bf16.msra.mxu0 %v2667
        %2797 = vmatprep.subr.bf16.mxu0 %v2670
        %2798 = vmatpush1.bf16.msra.mxu0 %v2669
        %2799 = vmatprep.subr.bf16.mxu0 %v2672
        %2800 = vmatpush1.bf16.msra.mxu0 %v2671
        %2801 = vmatprep.subr.bf16.mxu0 %v2674
        %2802 = vmatpush1.bf16.msra.mxu0 %v2673
        %2803 = vmatprep.subr.bf16.mxu0 %v2676
        %2804 = vmatpush1.bf16.msra.mxu0 %v2675
        %2805 = vmatprep.subr.bf16.mxu0 %v2678
        %2806 = vmatpush1.bf16.msra.mxu0 %v2677
        %2807 = vmatprep.subr.bf16.mxu0 %v2680
        %2808 = vmatpush1.bf16.msra.mxu0 %v2679
        %2809 = vmatprep.subr.bf16.mxu0 %v2682
        %2810 = vmatpush1.bf16.msra.mxu0 %v2681
        %2811 = vmatprep.subr.bf16.mxu0 %v2684
        %2812 = vmatpush1.bf16.msra.mxu0 %v2683
        %2813 = vmatprep.subr.bf16.mxu0 %v2686
        %2814 = vmatpush1.bf16.msra.mxu0 %v2685
        %2815 = vmatprep.subr.bf16.mxu0 %v2688
        %2816 = vmatpush1.bf16.msra.mxu0 %v2687
        %2817 = vmatprep.subr.bf16.mxu0 %v2690
        %2818 = vmatpush1.bf16.msra.mxu0 %v2689
        %2819 = vmatprep.subr.bf16.mxu0 %v2692
        %2820 = vmatpush1.bf16.msra.mxu0 %v2691
        %2821 = vmatprep.subr.bf16.mxu0 %v2694
        %2822 = vmatpush1.bf16.msra.mxu0 %v2693
        %2823 = vmatprep.mubr.bf16.mxu0 %v2404
        %2824 = vmatmul.mubr.bf16.gmra.mrb[0].mxu0 %v2403
        %v2825 = vpop.f32.mrb[0].mxu0
        %v2826 = vadd.f32 0.0, %v2825
        %v2827 = vpop.f32.mrb[0].mxu0
        %v2828 = vadd.f32 0.0, %v2827
        %v2829 = vpop.f32.mrb[0].mxu0
        %v2830 = vpop.f32.mrb[0].mxu0
        %2831 = vdwg.mxu0
        %2832 = vmatprep.subr.bf16.mxu0 %v2696
        %2833 = vmatpush1.bf16.msra.mxu0 %v2695
        %2834 = vmatprep.subr.bf16.mxu0 %v2698
        %2835 = vmatpush1.bf16.msra.mxu0 %v2697
        %2836 = vmatprep.subr.bf16.mxu0 %v2700
        %2837 = vmatpush1.bf16.msra.mxu0 %v2699
        %2838 = vmatprep.subr.bf16.mxu0 %v2702
        %2839 = vmatpush1.bf16.msra.mxu0 %v2701
        %2840 = vmatprep.subr.bf16.mxu0 %v2704
        %2841 = vmatpush1.bf16.msra.mxu0 %v2703
        %2842 = vmatprep.subr.bf16.mxu0 %v2706
        %2843 = vmatpush1.bf16.msra.mxu0 %v2705
        %2844 = vmatprep.subr.bf16.mxu0 %v2708
        %2845 = vmatpush1.bf16.msra.mxu0 %v2707
        %2846 = vmatprep.subr.bf16.mxu0 %v2710
        %2847 = vmatpush1.bf16.msra.mxu0 %v2709
        %2848 = vmatprep.subr.bf16.mxu0 %v2712
        %2849 = vmatpush1.bf16.msra.mxu0 %v2711
        %2850 = vmatprep.subr.bf16.mxu0 %v2714
        %2851 = vmatpush1.bf16.msra.mxu0 %v2713
        %2852 = vmatprep.subr.bf16.mxu0 %v2716
        %2853 = vmatpush1.bf16.msra.mxu0 %v2715
        %2854 = vmatprep.subr.bf16.mxu0 %v2718
        %2855 = vmatpush1.bf16.msra.mxu0 %v2717
        %2856 = vmatprep.subr.bf16.mxu0 %v2720
        %2857 = vmatpush1.bf16.msra.mxu0 %v2719
        %2858 = vmatprep.subr.bf16.mxu0 %v2722
        %2859 = vmatpush1.bf16.msra.mxu0 %v2721
        %2860 = vmatprep.subr.bf16.mxu0 %v2724
        %2861 = vmatpush1.bf16.msra.mxu0 %v2723
        %2862 = vmatprep.subr.bf16.mxu0 %v2726
        %2863 = vmatpush1.bf16.msra.mxu0 %v2725
        %2864 = vmatprep.mubr.bf16.mxu0 %v2406
        %2865 = vmatmul.mubr.bf16.gmra.mrb[0].mxu0 %v2405
        %v2866 = vpop.f32.mrb[0].mxu0
        %v2867 = vadd.f32 %v2826, %v2866
        %v2868 = vpop.f32.mrb[0].mxu0
        %v2869 = vadd.f32 %v2828, %v2868
        %v2870 = vpop.f32.mrb[0].mxu0
        %v2871 = vpop.f32.mrb[0].mxu0
        %2872 = vdwg.mxu0
        %v2873 = vadd.f32 %v1411, %v2867
        %v2874 = vadd.f32 %v1412, %v2869
        %2875 = vst [vmem:[%s475] sm:$0xff] %v2873
        %2876 = vst [vmem:[%s475 + $0x8] sm:$0xff] %v2874
        %s2877 = sand.u32 %s275, 1
        %s2878 = scalar_lea.sflag [#allocation4], %s2877
        %s2879 = sand.u32 %s275, 1
        %s2880 = smul.addr %s2879, 16
        %s2881 = scalar_lea.vmem [#allocation13], %s2880
        // Predicated region
        $region89: #{tpu_custom_call.1} parent=63 // pred_check
          %p2882 = pneg %p285
        $region90: #{tpu_custom_call.1} parent=63 // pred_check_branch
          %2884 = sbr.rel (%p2882) target = $region92
        $region91: #{tpu_custom_call.1} parent=63 // pred_region
          %s2886 = ssub.s32 256, 256
          %2887 = vsyncadd %s2878, %s2886
          %s2888 = smul.addr %s31, 2
          %s2889 = smul.addr %s2888, 128
          %s2890 = scalar_lea.hbm %s11, %s2889
          %s2892 = sshll.u32 %s2881, 4
          %s2893 = int_to_ptr.vmem [resolvable:$true] %s2892
          %2895 = dma.vmem_to_hbm [thread:$0]  %s2893, 256, %s2890, %s2878
        $region92: #{tpu_custom_call.1} parent=63 // pred_fallthru
          _
      $region64: #{tpu_custom_call.1} parent=5 // pred_fallthru
        _
      %p2896 = scmp.le.s32.totalorder 2, %s26
      // Predicated region
      $region93: #{tpu_custom_call.1} parent=5 // pred_check
        %p2897 = pneg %p2896
      $region94: #{tpu_custom_call.1} parent=5 // pred_check_branch
        %2899 = sbr.rel (%p2897) target = $region96
      $region95: #{tpu_custom_call.1} parent=5 // pred_region
        %s2900 = ssub.s32 %s26, 2
        // Predicated region
        $region97: #{tpu_custom_call.1} parent=95 // pred_check
          %p2901 = pneg %p291
        $region98: #{tpu_custom_call.1} parent=95 // pred_check_branch
          %2903 = sbr.rel (%p2901) target = $region100
        $region99: #{tpu_custom_call.1} parent=95 // pred_region
          %s2904 = sand.u32 %s276, 1
          %s2905 = scalar_lea.sflag [#allocation4], %s2904
          %s2906 = sand.u32 %s276, 1
          %s2907 = smul.addr %s2906, 16
          %s2908 = scalar_lea.vmem [#allocation13], %s2907
          %2909 = dma.done %s2905, 256
        $region100: #{tpu_custom_call.1} parent=95 // pred_fallthru
          _
      $region96: #{tpu_custom_call.1} parent=5 // pred_fallthru
        _
    $region6: #{tpu_custom_call.1} parent=1 // loop_footer
      %s30 = sadd.s32 1, %s26
    $region7: #{tpu_custom_call.1} parent=1 // loop_footer_branch
      %25 = sbr.rel target = $region3
    $region8: #{tpu_custom_call.1} parent=1 // loop_exit
      _
    %2910 = vsyncpa [#allocation3], 1
    %s2911 = scalar_lea.sflag [#allocation3], 1
    %2912 = vsyncpa %s2911, 1
    %2913 = vsyncpa [#allocation6], 1
    %2914 = vsyncpa [#allocation9], 1
    %2915 = vsyncpa [#allocation12], 1
    %2916 = vsyncpa [#allocation4], 1
    %s2917 = scalar_lea.sflag [#allocation4], 1
    %2918 = vsyncpa %s2917, 1

</llo_original>
